<compile_context>
chip_gen: v7x
topology: tpu7x:2x2x1
jax: 0.10.0
libtpu: 0.0.40
codegen_flags: <defaults>
</compile_context>

<pallas_src>
import jax
import jax.numpy as jnp
from jax import lax
from jax.experimental import pallas as pl
from jax.experimental.pallas import tpu as pltpu

LANE = 128


def _round_up(x, m):
    return ((x + m - 1) // m) * m


def _pick_group_size(b, n, target_rows=256):
    """Largest G dividing B with G*N <= target_rows (MXU row fill; 256 for v6e/v7x)."""
    g = max(1, min(b, max(1, target_rows // max(n, 1))))
    while b % g:
        g -= 1
    return g


# ----------------------------- Pallas kernel -------------------------------

def encoder_kernel(adj_ref, x_ref, w1a_ref, wst_ref, bst_ref, wo_ref, bo_ref, out_ref):
    adj = adj_ref[...]                  # (G, N, N) bf16, A + I folded (GIN eps = 0)
    x = x_ref[...]                      # (G, N, E) bf16 embedded node features
    bst = bst_ref[...]                  # (4, Hp) f32 biases (BN folded into b1a / b2a)
    g, n, _ = adj.shape
    m = g * n

    def gin_conv(feat3, wa, ba, wb, bb):
        # (A + I) @ x  == (1+eps)*x + neighbor-sum, batched over the graph group.
        agg = jnp.einsum('gij,gjd->gid', adj, feat3,
                         preferred_element_type=jnp.float32)
        agg = agg.reshape(m, feat3.shape[-1])          # flatten rows -> wide MXU matmuls
        # MLP: Linear (BatchNorm folded) -> ReLU -> Dropout(identity) -> Linear
        h = jnp.dot(agg.astype(jnp.bfloat16), wa, preferred_element_type=jnp.float32) + ba
        h = jnp.maximum(h, 0.0)
        # TODO(synk): nn.Dropout is identity here (inference); training-mode masking not implemented.
        h = jnp.dot(h.astype(jnp.bfloat16), wb, preferred_element_type=jnp.float32) + bb
        return h                                       # (m, Hp) f32

    h = gin_conv(x, w1a_ref[...], bst[0:1, :], wst_ref[0], bst[1:2, :])
    h = jnp.maximum(h, 0.0)                            # F.relu after conv1
    h = gin_conv(h.astype(jnp.bfloat16).reshape(g, n, -1),
                 wst_ref[1], bst[2:3, :], wst_ref[2], bst[3:4, :])
    h = jnp.maximum(h, 0.0)                            # F.relu after conv2

    # output linear (lane-dense, 128-wide store; padding sliced off in the wrapper jit)
    out_ref[...] = jnp.dot(h.astype(jnp.bfloat16), wo_ref[...],
                           preferred_element_type=jnp.float32) + bo_ref[...]


# --------------------------- parameter plumbing ----------------------------

def init_params(key, num_nodes, embedding_dim, hidden_dim, output_dim):
    """Deterministic synthetic parameter init (mirrors the nn.Module __init__ shapes)."""
    ks = jax.random.split(key, 10)
    s = 0.1

    def lin(k, din, dout):
        kw, kb = jax.random.split(k)
        return (jax.random.normal(kw, (din, dout), jnp.float32) * s,
                jax.random.normal(kb, (1, dout), jnp.float32) * s)

    def bn(k, dim):
        kg, kb, km, kv = jax.random.split(k, 4)
        return (1.0 + 0.1 * jax.random.normal(kg, (1, dim), jnp.float32),            # gamma
                0.1 * jax.random.normal(kb, (1, dim), jnp.float32),                  # beta
                0.1 * jax.random.normal(km, (1, dim), jnp.float32),                  # running_mean
                1.0 + 0.1 * jnp.abs(jax.random.normal(kv, (1, dim), jnp.float32)))   # running_var

    params = {"embedding": jax.random.normal(ks[0], (num_nodes, embedding_dim), jnp.float32) * s}
    params["w1a"], params["b1a"] = lin(ks[1], embedding_dim, hidden_dim)
    params["g1"], params["be1"], params["m1"], params["v1"] = bn(ks[2], hidden_dim)
    params["w1b"], params["b1b"] = lin(ks[3], hidden_dim, hidden_dim)
    params["w2a"], params["b2a"] = lin(ks[4], hidden_dim, hidden_dim)
    params["g2"], params["be2"], params["m2"], params["v2"] = bn(ks[5], hidden_dim)
    params["w2b"], params["b2b"] = lin(ks[6], hidden_dim, hidden_dim)
    params["wo"], params["bo"] = lin(ks[7], hidden_dim, output_dim)
    return params


def _fold_bn(w, b, gamma, beta, mean, var, eps=1e-5):
    """Fold eval-mode BatchNorm1d into the preceding Linear (exact affine identity)."""
    s = gamma * lax.rsqrt(var + eps)                   # [1, H]
    return w * s, (b - mean) * s + beta


def _pad2(a, rows, cols):
    return jnp.pad(a, ((0, rows - a.shape[0]), (0, cols - a.shape[1])))


# ------------------------------ JAX wrapper --------------------------------

def _forward(node_features, edge_index, params):
    """node_features: [B, N] (or [N]) int32 node ids; edge_index: [B, 2, E] (or [2, E]) int32."""
    single = node_features.ndim == 1
    if single:
        node_features = node_features[None]
        edge_index = edge_index[None]

    b, n = node_features.shape
    emb_dim = params["embedding"].shape[1]
    hidden = params["w1b"].shape[0]
    out_dim = params["wo"].shape[1]
    hp = _round_up(hidden, LANE)
    op = _round_up(out_dim, LANE)

    # ---- fold BN and pack/stack weights (all fused into this jit) ----
    w1a_f, b1a_f = _fold_bn(params["w1a"], params["b1a"], params["g1"], params["be1"],
                            params["m1"], params["v1"])
    w2a_f, b2a_f = _fold_bn(params["w2a"], params["b2a"], params["g2"], params["be2"],
                            params["m2"], params["v2"])

    w1a = _pad2(w1a_f, emb_dim, hp).astype(jnp.bfloat16)                 # (E,  hp)  -- emb NOT padded
    wst = jnp.stack([_pad2(params["w1b"], hp, hp),                       # (3, hp, hp)
                     _pad2(w2a_f, hp, hp),
                     _pad2(params["w2b"], hp, hp)]).astype(jnp.bfloat16)
    bst = jnp.stack([_pad2(b1a_f, 1, hp)[0],                             # (4, hp) f32
                     _pad2(params["b1b"], 1, hp)[0],
                     _pad2(b2a_f, 1, hp)[0],
                     _pad2(params["b2b"], 1, hp)[0]])
    wo = _pad2(params["wo"], hp, op).astype(jnp.bfloat16)                # (hp, op)
    bo = _pad2(params["bo"], 1, op)                                      # (1,  op) f32

    # ---- glue (fused under jit): embedding gather + dense adjacency w/ self-loops ----
    x = jnp.take(params["embedding"], node_features, axis=0).astype(jnp.bfloat16)   # (B, N, E)

    def build_adj(ei):
        src, dst = ei[0], ei[1]
        a = jnp.zeros((n, n), jnp.float32).at[dst, src].add(1.0)         # row = target node
        return a + jnp.eye(n, dtype=jnp.float32)                         # fold self loop (eps = 0)
    adj = jax.vmap(build_adj)(edge_index).astype(jnp.bfloat16)           # (B, N, N)

    # ---- grid: groups of G graphs per step so M = G*N fills the MXU ----
    # target_rows=256 suits v6e/v7x; v5e saturates at 128 (G is capped by B anyway).
    g = _pick_group_size(b, n, target_rows=256)
    nb = b // g
    m = g * n

    flops = int(b * 2 * n * n * (emb_dim + hp)                           # two aggregation matmuls
                + b * n * (2 * emb_dim * hp + 6 * hp * hp)               # four MLP linears
                + b * n * 2 * hp * op)                                   # output linear
    bytes_accessed = int(adj.size * 2 + x.size * 2 + b * n * op * 4
                         + w1a.size * 2 + wst.size * 2 + bst.size * 4
                         + wo.size * 2 + bo.size * 4)

    out = pl.pallas_call(
        encoder_kernel,
        out_shape=jax.ShapeDtypeStruct((b * n, op), jnp.float32),
        grid=(nb,),
        in_specs=[
            pl.BlockSpec((g, n, n), lambda i: (i, 0, 0)),                # adjacency group
            pl.BlockSpec((g, n, emb_dim), lambda i: (i, 0, 0)),          # features group
            pl.BlockSpec((emb_dim, hp), lambda i: (0, 0)),               # w1a (VMEM-resident)
            pl.BlockSpec((3, hp, hp), lambda i: (0, 0, 0)),              # stacked hidden weights
            pl.BlockSpec((4, hp), lambda i: (0, 0)),                     # stacked hidden biases
            pl.BlockSpec((hp, op), lambda i: (0, 0)),                    # output weight
            pl.BlockSpec((1, op), lambda i: (0, 0)),                     # output bias
        ],
        out_specs=pl.BlockSpec((m, op), lambda i: (i, 0)),
        compiler_params=pltpu.CompilerParams(dimension_semantics=("parallel",)),
        cost_estimate=pl.CostEstimate(flops=flops, transcendentals=0,
                                      bytes_accessed=bytes_accessed),
    )(adj, x, w1a, wst, bst, wo, bo)

    out = out.reshape(b, n, op)[..., :out_dim]                           # drop lane padding (fused)
    return out[0] if single else out


haterogenic_graph_node_encoder = jax.jit(_forward)


# ----------------------------- pure-JAX reference ---------------------------

def reference_forward(node_features, edge_index, params):
    """Full f32 reference with the original (unfolded) module semantics."""
    def one_graph(ids, ei):
        x = params["embedding"][ids]
        n = ids.shape[0]
        src, dst = ei[0], ei[1]
        adj = jnp.zeros((n, n), jnp.float32).at[dst, src].add(1.0)

        def mlp(h, wa, ba, g, be, m, v, wb, bb):
            h = h @ wa + ba
            h = (h - m) * g / jnp.sqrt(v + 1e-5) + be
            h = jnp.maximum(h, 0.0)
            return h @ wb + bb

        h = mlp(adj @ x + x, params["w1a"], params["b1a"], params["g1"], params["be1"],
                params["m1"], params["v1"], params["w1b"], params["b1b"])
        h = jnp.maximum(h, 0.0)
        h = mlp(adj @ h + h, params["w2a"], params["b2a"], params["g2"], params["be2"],
                params["m2"], params["v2"], params["w2b"], params["b2b"])
        h = jnp.maximum(h, 0.0)
        return h @ params["wo"] + params["bo"]

    return jax.vmap(one_graph)(node_features, edge_index)


# --------------------------------- main ------------------------------------

if __name__ == "__main__":
    # Module hyperparameters (small).
    NUM_NODES_VOCAB = 64      # embedding table size
    EMBEDDING_DIM = 32
    HIDDEN_DIM = 32
    OUTPUT_DIM = 16

    # Graph batch.
    B_GRAPHS = 4
    N_GRAPH_NODES = 32
    N_EDGES = 64

    key = jax.random.PRNGKey(0)
    k_param, k_ids, k_edges = jax.random.split(key, 3)

    params = init_params(k_param, NUM_NODES_VOCAB, EMBEDDING_DIM, HIDDEN_DIM, OUTPUT_DIM)

    node_features = jax.random.randint(k_ids, (B_GRAPHS, N_GRAPH_NODES), 0,
                                       NUM_NODES_VOCAB, jnp.int32)
    edge_index = jax.random.randint(k_edges, (B_GRAPHS, 2, N_EDGES), 0,
                                    N_GRAPH_NODES, jnp.int32)

    out = haterogenic_graph_node_encoder(node_features, edge_index, params)
    out = jax.block_until_ready(out)
    assert out.shape == (B_GRAPHS, N_GRAPH_NODES, OUTPUT_DIM)
    assert jnp.all(jnp.isfinite(out))

    ref = reference_forward(node_features, edge_index, params)
    assert jnp.allclose(out, ref, rtol=5e-2, atol=1e-2), float(jnp.max(jnp.abs(out - ref)))
    print("KERNEL_OK")
</pallas_src>

<mosaic_0001>
module attributes {stable_mosaic.version = 11 : i64} {
  func.func private @main(%arg0: i32) attributes {dimension_semantics = [#tpu.dimension_semantics<core_parallel>], iteration_bounds = array<i64: 2>, tpu.core_type = #tpu.core_type<sc_scalar_subcore>, window_params = []} {
    return
  }
}

module attributes {stable_mosaic.version = 11 : i64} {
  func.func private @main(%arg0: i32) attributes {dimension_semantics = [#tpu.dimension_semantics<core_parallel>], iteration_bounds = array<i64: 2>, tpu.core_type = #tpu.core_type<sc_scalar_subcore>, window_params = []} {
    return
  }
}

module attributes {stable_mosaic.version = 11 : i64} {
  func.func @encoder_kernel(%arg0: i32, %arg1: memref<4x32x32xbf16, #tpu.memory_space<vmem>>, %arg2: memref<4x32x32xbf16, #tpu.memory_space<vmem>>, %arg3: memref<32x128xbf16, #tpu.memory_space<vmem>>, %arg4: memref<3x128x128xbf16, #tpu.memory_space<vmem>>, %arg5: memref<4x128xf32, #tpu.memory_space<vmem>>, %arg6: memref<128x128xbf16, #tpu.memory_space<vmem>>, %arg7: memref<1x128xf32, #tpu.memory_space<vmem>>, %arg8: memref<128x128xf32, #tpu.memory_space<vmem>>) attributes {dimension_semantics = [#tpu.dimension_semantics<parallel>], iteration_bounds = array<i64: 1>, scalar_prefetch = 0 : i64, scratch_operands = 0 : i64, tpu.core_type = #tpu.core_type<tc>, window_params = [{transform_indices = @transform_0, window_bounds = array<i64: 4, 32, 32>}, {transform_indices = @transform_1, window_bounds = array<i64: 4, 32, 32>}, {pipeline_mode = #tpu.pipeline_mode<synchronous>, transform_indices = @transform_2, window_bounds = array<i64: 32, 128>}, {pipeline_mode = #tpu.pipeline_mode<synchronous>, transform_indices = @transform_3, window_bounds = array<i64: 3, 128, 128>}, {pipeline_mode = #tpu.pipeline_mode<synchronous>, transform_indices = @transform_4, window_bounds = array<i64: 4, 128>}, {pipeline_mode = #tpu.pipeline_mode<synchronous>, transform_indices = @transform_5, window_bounds = array<i64: 128, 128>}, {pipeline_mode = #tpu.pipeline_mode<synchronous>, transform_indices = @transform_6, window_bounds = array<i64: 1, 128>}, {transform_indices = @transform_7, window_bounds = array<i64: 128, 128>}]} {
    %c0 = arith.constant 0 : index
    %c0_0 = arith.constant 0 : index
    %c0_1 = arith.constant 0 : index
    %0 = vector.load %arg1[%c0, %c0_0, %c0_1] : memref<4x32x32xbf16, #tpu.memory_space<vmem>>, vector<4x32x32xbf16>
    %c0_2 = arith.constant 0 : index
    %c0_3 = arith.constant 0 : index
    %c0_4 = arith.constant 0 : index
    %1 = vector.load %arg2[%c0_2, %c0_3, %c0_4] : memref<4x32x32xbf16, #tpu.memory_space<vmem>>, vector<4x32x32xbf16>
    %c0_5 = arith.constant 0 : index
    %c0_6 = arith.constant 0 : index
    %2 = vector.load %arg5[%c0_5, %c0_6] : memref<4x128xf32, #tpu.memory_space<vmem>>, vector<4x128xf32>
    %c0_7 = arith.constant 0 : index
    %c0_8 = arith.constant 0 : index
    %3 = vector.load %arg3[%c0_7, %c0_8] : memref<32x128xbf16, #tpu.memory_space<vmem>>, vector<32x128xbf16>
    %4 = vector.extract_strided_slice %2 {offsets = [0, 0], sizes = [1, 128], strides = [1, 1]} : vector<4x128xf32> to vector<1x128xf32>
    %c0_9 = arith.constant 0 : index
    %c0_10 = arith.constant 0 : index
    %c0_11 = arith.constant 0 : index
    %5 = vector.load %arg4[%c0_9, %c0_10, %c0_11] : memref<3x128x128xbf16, #tpu.memory_space<vmem>>, vector<1x128x128xbf16>
    %6 = vector.shape_cast %5 : vector<1x128x128xbf16> to vector<128x128xbf16>
    %7 = vector.extract_strided_slice %2 {offsets = [1, 0], sizes = [1, 128], strides = [1, 1]} : vector<4x128xf32> to vector<1x128xf32>
    "tpu.trace_start"() <{level = 10 : i32, message = "gij,gjd->gid"}> : () -> ()
    %cst = arith.constant dense<0.000000e+00> : vector<4x32x32xf32>
    %8 = tpu.matmul %0, %1, %cst {dimension_numbers = #tpu.dot_dimension_numbers<[2], [1], [1], [2], [0, 0, 0, 1, 1, 2], [0], [0]>} : vector<4x32x32xbf16>, vector<4x32x32xbf16>, vector<4x32x32xf32> -> vector<4x32x32xf32>
    "tpu.trace_stop"() : () -> ()
    %9 = vector.shape_cast %8 : vector<4x32x32xf32> to vector<128x32xf32>
    %10 = arith.truncf %9 : vector<128x32xf32> to vector<128x32xbf16>
    %cst_12 = arith.constant dense<0.000000e+00> : vector<128x128xf32>
    %11 = tpu.matmul %10, %3, %cst_12 {dimension_numbers = #tpu.dot_dimension_numbers<[1], [0], [0], [1], [0, 0, 1, 1], [], []>} : vector<128x32xbf16>, vector<32x128xbf16>, vector<128x128xf32> -> vector<128x128xf32>
    %12 = vector.broadcast %4 : vector<1x128xf32> to vector<128x128xf32>
    %13 = arith.addf %11, %12 : vector<128x128xf32>
    %cst_13 = arith.constant 0.000000e+00 : f32
    %14 = vector.broadcast %cst_13 : f32 to vector<128x128xf32>
    %15 = arith.maximumf %13, %14 : vector<128x128xf32>
    %16 = arith.truncf %15 : vector<128x128xf32> to vector<128x128xbf16>
    %cst_14 = arith.constant dense<0.000000e+00> : vector<128x128xf32>
    %17 = tpu.matmul %16, %6, %cst_14 {dimension_numbers = #tpu.dot_dimension_numbers<[1], [0], [0], [1], [0, 0, 1, 1], [], []>} : vector<128x128xbf16>, vector<128x128xbf16>, vector<128x128xf32> -> vector<128x128xf32>
    %18 = vector.broadcast %7 : vector<1x128xf32> to vector<128x128xf32>
    %19 = arith.addf %17, %18 : vector<128x128xf32>
    %cst_15 = arith.constant 0.000000e+00 : f32
    %20 = vector.broadcast %cst_15 : f32 to vector<128x128xf32>
    %21 = arith.maximumf %19, %20 : vector<128x128xf32>
    %22 = arith.truncf %21 : vector<128x128xf32> to vector<128x128xbf16>
    %23 = vector.shape_cast %22 : vector<128x128xbf16> to vector<4x32x128xbf16>
    %c1 = arith.constant 1 : index
    %c0_16 = arith.constant 0 : index
    %c0_17 = arith.constant 0 : index
    %24 = vector.load %arg4[%c1, %c0_16, %c0_17] : memref<3x128x128xbf16, #tpu.memory_space<vmem>>, vector<1x128x128xbf16>
    %25 = vector.shape_cast %24 : vector<1x128x128xbf16> to vector<128x128xbf16>
    %26 = vector.extract_strided_slice %2 {offsets = [2, 0], sizes = [1, 128], strides = [1, 1]} : vector<4x128xf32> to vector<1x128xf32>
    %c2 = arith.constant 2 : index
    %c0_18 = arith.constant 0 : index
    %c0_19 = arith.constant 0 : index
    %27 = vector.load %arg4[%c2, %c0_18, %c0_19] : memref<3x128x128xbf16, #tpu.memory_space<vmem>>, vector<1x128x128xbf16>
    %28 = vector.shape_cast %27 : vector<1x128x128xbf16> to vector<128x128xbf16>
    %29 = vector.extract_strided_slice %2 {offsets = [3, 0], sizes = [1, 128], strides = [1, 1]} : vector<4x128xf32> to vector<1x128xf32>
    "tpu.trace_start"() <{level = 10 : i32, message = "gij,gjd->gid"}> : () -> ()
    %cst_20 = arith.constant dense<0.000000e+00> : vector<4x32x128xf32>
    %30 = tpu.matmul %0, %23, %cst_20 {dimension_numbers = #tpu.dot_dimension_numbers<[2], [1], [1], [2], [0, 0, 0, 1, 1, 2], [0], [0]>} : vector<4x32x32xbf16>, vector<4x32x128xbf16>, vector<4x32x128xf32> -> vector<4x32x128xf32>
    "tpu.trace_stop"() : () -> ()
    %31 = vector.shape_cast %30 : vector<4x32x128xf32> to vector<128x128xf32>
    %32 = arith.truncf %31 : vector<128x128xf32> to vector<128x128xbf16>
    %cst_21 = arith.constant dense<0.000000e+00> : vector<128x128xf32>
    %33 = tpu.matmul %32, %25, %cst_21 {dimension_numbers = #tpu.dot_dimension_numbers<[1], [0], [0], [1], [0, 0, 1, 1], [], []>} : vector<128x128xbf16>, vector<128x128xbf16>, vector<128x128xf32> -> vector<128x128xf32>
    %34 = vector.broadcast %26 : vector<1x128xf32> to vector<128x128xf32>
    %35 = arith.addf %33, %34 : vector<128x128xf32>
    %cst_22 = arith.constant 0.000000e+00 : f32
    %36 = vector.broadcast %cst_22 : f32 to vector<128x128xf32>
    %37 = arith.maximumf %35, %36 : vector<128x128xf32>
    %38 = arith.truncf %37 : vector<128x128xf32> to vector<128x128xbf16>
    %cst_23 = arith.constant dense<0.000000e+00> : vector<128x128xf32>
    %39 = tpu.matmul %38, %28, %cst_23 {dimension_numbers = #tpu.dot_dimension_numbers<[1], [0], [0], [1], [0, 0, 1, 1], [], []>} : vector<128x128xbf16>, vector<128x128xbf16>, vector<128x128xf32> -> vector<128x128xf32>
    %40 = vector.broadcast %29 : vector<1x128xf32> to vector<128x128xf32>
    %41 = arith.addf %39, %40 : vector<128x128xf32>
    %cst_24 = arith.constant 0.000000e+00 : f32
    %42 = vector.broadcast %cst_24 : f32 to vector<128x128xf32>
    %43 = arith.maximumf %41, %42 : vector<128x128xf32>
    %44 = arith.truncf %43 : vector<128x128xf32> to vector<128x128xbf16>
    %c0_25 = arith.constant 0 : index
    %c0_26 = arith.constant 0 : index
    %45 = vector.load %arg6[%c0_25, %c0_26] : memref<128x128xbf16, #tpu.memory_space<vmem>>, vector<128x128xbf16>
    %cst_27 = arith.constant dense<0.000000e+00> : vector<128x128xf32>
    %46 = tpu.matmul %44, %45, %cst_27 {dimension_numbers = #tpu.dot_dimension_numbers<[1], [0], [0], [1], [0, 0, 1, 1], [], []>} : vector<128x128xbf16>, vector<128x128xbf16>, vector<128x128xf32> -> vector<128x128xf32>
    %c0_28 = arith.constant 0 : index
    %c0_29 = arith.constant 0 : index
    %47 = vector.load %arg7[%c0_28, %c0_29] : memref<1x128xf32, #tpu.memory_space<vmem>>, vector<1x128xf32>
    %48 = vector.broadcast %47 : vector<1x128xf32> to vector<128x128xf32>
    %49 = arith.addf %46, %48 : vector<128x128xf32>
    %c0_30 = arith.constant 0 : index
    %c0_31 = arith.constant 0 : index
    %50 = vector.load %arg8[%c0_30, %c0_31] : memref<128x128xf32, #tpu.memory_space<vmem>>, vector<128x128xf32>
    tpu.vector_store %arg8[%c0_30, %c0_31], %49 {strides = array<i32>} : memref<128x128xf32, #tpu.memory_space<vmem>>, vector<128x128xf32>,
    return
  }
  func.func @transform_0(%arg0: i32) -> (i32, i32, i32) {
    %c0_i32 = arith.constant 0 : i32
    %c0_i32_0 = arith.constant 0 : i32
    %c0_i32_1 = arith.constant 0 : i32
    return %arg0, %c0_i32, %c0_i32_0 : i32, i32, i32
  }
  func.func @transform_1(%arg0: i32) -> (i32, i32, i32) {
    %c0_i32 = arith.constant 0 : i32
    %c0_i32_0 = arith.constant 0 : i32
    %c0_i32_1 = arith.constant 0 : i32
    return %arg0, %c0_i32, %c0_i32_0 : i32, i32, i32
  }
  func.func @transform_2(%arg0: i32) -> (i32, i32) {
    %c0_i32 = arith.constant 0 : i32
    %c0_i32_0 = arith.constant 0 : i32
    %c0_i32_1 = arith.constant 0 : i32
    return %c0_i32, %c0_i32_0 : i32, i32
  }
  func.func @transform_3(%arg0: i32) -> (i32, i32, i32) {
    %c0_i32 = arith.constant 0 : i32
    %c0_i32_0 = arith.constant 0 : i32
    %c0_i32_1 = arith.constant 0 : i32
    %c0_i32_2 = arith.constant 0 : i32
    return %c0_i32, %c0_i32_0, %c0_i32_1 : i32, i32, i32
  }
  func.func @transform_4(%arg0: i32) -> (i32, i32) {
    %c0_i32 = arith.constant 0 : i32
    %c0_i32_0 = arith.constant 0 : i32
    %c0_i32_1 = arith.constant 0 : i32
    return %c0_i32, %c0_i32_0 : i32, i32
  }
  func.func @transform_5(%arg0: i32) -> (i32, i32) {
    %c0_i32 = arith.constant 0 : i32
    %c0_i32_0 = arith.constant 0 : i32
    %c0_i32_1 = arith.constant 0 : i32
    return %c0_i32, %c0_i32_0 : i32, i32
  }
  func.func @transform_6(%arg0: i32) -> (i32, i32) {
    %c0_i32 = arith.constant 0 : i32
    %c0_i32_0 = arith.constant 0 : i32
    %c0_i32_1 = arith.constant 0 : i32
    return %c0_i32, %c0_i32_0 : i32, i32
  }
  func.func @transform_7(%arg0: i32) -> (i32, i32) {
    %c0_i32 = arith.constant 0 : i32
    %c0_i32_0 = arith.constant 0 : i32
    return %arg0, %c0_i32 : i32, i32
  }
}

</mosaic_0001>

<llo_original>
// kernel: _forward.1
$region0: #{_forward.1}
  #allocation0 [shape = 'u32[]', space=smem, size = 0x4, offset = 0x4, fixed_abs, tag = 'smem constant byte address 0x4 - core index']
  #allocation1 [shape = 'u32[144,128]{1,0:T(1,128)}', space=vmem, size = 0x12000, scoped, tag = 'internal scratch']
  %s0 = inlined_call_operand.vmem [shape: bf16[4,32,32], index: 0, kind: input, shape index: {}]
  %s1 = inlined_call_operand.vmem [shape: bf16[4,32,32], index: 1, kind: input, shape index: {}]
  %s2 = inlined_call_operand.vmem [shape: bf16[32,128], index: 2, kind: input, shape index: {}]
  %s3 = inlined_call_operand.vmem [shape: bf16[3,128,128], index: 3, kind: input, shape index: {}]
  %s4 = inlined_call_operand.vmem [shape: f32[4,128], index: 4, kind: input, shape index: {}]
  %s5 = inlined_call_operand.vmem [shape: bf16[128,128], index: 5, kind: input, shape index: {}]
  %s6 = inlined_call_operand.vmem [shape: f32[1,128], index: 6, kind: input, shape index: {}]
  %s7 = inlined_call_operand.vmem [shape: f32[128,128], index: 7, kind: output, shape index: {}]
  %s8 = sld [smem:[#allocation0]]
  $region38: #{_forward.1} parent=0
    _
  %s10 = ssub.s32 1, %s8
  %s11 = scalar_select 0, %s10, %s8
  // Predicated region
  $region2: #{_forward.1} parent=0 // pred_check
    _
  $region3: #{_forward.1} parent=0 // pred_check_branch
    %13 = sbr.rel (0) target = $region5
  $region4: #{_forward.1} parent=0 // pred_region
    _
  $region5: #{_forward.1} parent=0 // pred_fallthru
    _
  // Predicated region
  $region6: #{_forward.1} parent=0 // pred_check
    _
  $region7: #{_forward.1} parent=0 // pred_check_branch
    %15 = sbr.rel (0) target = $region9
  $region8: #{_forward.1} parent=0 // pred_region
    _
  $region9: #{_forward.1} parent=0 // pred_fallthru
    _
  // Predicated region
  $region10: #{_forward.1} parent=0 // pred_check
    _
  $region11: #{_forward.1} parent=0 // pred_check_branch
    %17 = sbr.rel (0) target = $region13
  $region12: #{_forward.1} parent=0 // pred_region
    _
  $region13: #{_forward.1} parent=0 // pred_fallthru
    _
  // Predicated region
  $region14: #{_forward.1} parent=0 // pred_check
    _
  $region15: #{_forward.1} parent=0 // pred_check_branch
    %19 = sbr.rel (0) target = $region17
  $region16: #{_forward.1} parent=0 // pred_region
    _
  $region17: #{_forward.1} parent=0 // pred_fallthru
    _
  // Predicated region
  $region18: #{_forward.1} parent=0 // pred_check
    _
  $region19: #{_forward.1} parent=0 // pred_check_branch
    %21 = sbr.rel (0) target = $region21
  $region20: #{_forward.1} parent=0 // pred_region
    _
  $region21: #{_forward.1} parent=0 // pred_fallthru
    _
  // Predicated region
  $region22: #{_forward.1} parent=0 // pred_check
    _
  $region23: #{_forward.1} parent=0 // pred_check_branch
    %23 = sbr.rel (0) target = $region25
  $region24: #{_forward.1} parent=0 // pred_region
    _
  $region25: #{_forward.1} parent=0 // pred_fallthru
    _
  // Predicated region
  $region26: #{_forward.1} parent=0 // pred_check
    _
  $region27: #{_forward.1} parent=0 // pred_check_branch
    %25 = sbr.rel (0) target = $region29
  $region28: #{_forward.1} parent=0 // pred_region
    _
  $region29: #{_forward.1} parent=0 // pred_fallthru
    _
  %v27 = vld [vmem:[%s0] sm:$0xf]
  %v28 = vld [vmem:[%s0 + $0x4] sm:$0xf]
  %v29 = vld [vmem:[%s0 + $0x8] sm:$0xf]
  %v30 = vld [vmem:[%s0 + $0xc] sm:$0xf]
  %v31 = vld [vmem:[%s0 + $0x10] sm:$0xf]
  %v32 = vld [vmem:[%s0 + $0x14] sm:$0xf]
  %v33 = vld [vmem:[%s0 + $0x18] sm:$0xf]
  %v34 = vld [vmem:[%s0 + $0x1c] sm:$0xf]
  %v35 = vld [vmem:[%s0 + $0x20] sm:$0xf]
  %v36 = vld [vmem:[%s0 + $0x24] sm:$0xf]
  %v37 = vld [vmem:[%s0 + $0x28] sm:$0xf]
  %v38 = vld [vmem:[%s0 + $0x2c] sm:$0xf]
  %v39 = vld [vmem:[%s0 + $0x30] sm:$0xf]
  %v40 = vld [vmem:[%s0 + $0x34] sm:$0xf]
  %v41 = vld [vmem:[%s0 + $0x38] sm:$0xf]
  %v42 = vld [vmem:[%s0 + $0x3c] sm:$0xf]
  %v43 = vld [vmem:[%s1] sm:$0xf]
  %v44 = vld [vmem:[%s1 + $0x4] sm:$0xf]
  %v45 = vld [vmem:[%s1 + $0x8] sm:$0xf]
  %v46 = vld [vmem:[%s1 + $0xc] sm:$0xf]
  %v47 = vld [vmem:[%s1 + $0x10] sm:$0xf]
  %v48 = vld [vmem:[%s1 + $0x14] sm:$0xf]
  %v49 = vld [vmem:[%s1 + $0x18] sm:$0xf]
  %v50 = vld [vmem:[%s1 + $0x1c] sm:$0xf]
  %v51 = vld [vmem:[%s1 + $0x20] sm:$0xf]
  %v52 = vld [vmem:[%s1 + $0x24] sm:$0xf]
  %v53 = vld [vmem:[%s1 + $0x28] sm:$0xf]
  %v54 = vld [vmem:[%s1 + $0x2c] sm:$0xf]
  %v55 = vld [vmem:[%s1 + $0x30] sm:$0xf]
  %v56 = vld [vmem:[%s1 + $0x34] sm:$0xf]
  %v57 = vld [vmem:[%s1 + $0x38] sm:$0xf]
  %v58 = vld [vmem:[%s1 + $0x3c] sm:$0xf]
  %v59 = vld [vmem:[%s4] sm:$0xf]
  %v60 = vld [vmem:[%s2] sm:$0xf]
  %v61 = vld [vmem:[%s2 + $0x4] sm:$0xf]
  %v62 = vld [vmem:[%s2 + $0x8] sm:$0xf]
  %v63 = vld [vmem:[%s2 + $0xc] sm:$0xf]
  %v64 = vld [vmem:[%s3] sm:$0xf]
  %v65 = vld [vmem:[%s3 + $0x4] sm:$0xf]
  %v66 = vld [vmem:[%s3 + $0x8] sm:$0xf]
  %v67 = vld [vmem:[%s3 + $0xc] sm:$0xf]
  %v68 = vld [vmem:[%s3 + $0x10] sm:$0xf]
  %v69 = vld [vmem:[%s3 + $0x14] sm:$0xf]
  %v70 = vld [vmem:[%s3 + $0x18] sm:$0xf]
  %v71 = vld [vmem:[%s3 + $0x1c] sm:$0xf]
  %v72 = vld [vmem:[%s3 + $0x20] sm:$0xf]
  %v73 = vld [vmem:[%s3 + $0x24] sm:$0xf]
  %v74 = vld [vmem:[%s3 + $0x28] sm:$0xf]
  %v75 = vld [vmem:[%s3 + $0x2c] sm:$0xf]
  %v76 = vld [vmem:[%s3 + $0x30] sm:$0xf]
  %v77 = vld [vmem:[%s3 + $0x34] sm:$0xf]
  %v78 = vld [vmem:[%s3 + $0x38] sm:$0xf]
  %v79 = vld [vmem:[%s3 + $0x3c] sm:$0xf]
  %v84 = vunpack.c.l.b16 %v27
  %v85 = vunpack.c.l.b16 %v28
  %v86 = vunpack.c.l.b16 %v29
  %v87 = vunpack.c.l.b16 %v30
  %v88 = vpack.c.b16 %v85, %v84
  %v89 = vpack.c.b16 %v87, %v86
  %v94 = vunpack.c.l.b16 %v43
  %v95 = vunpack.c.l.b16 %v44
  %v96 = vunpack.c.l.b16 %v45
  %v97 = vunpack.c.l.b16 %v46
  %v98 = vpack.c.b16 %v95, %v94
  %v99 = vpack.c.b16 %v97, %v96
  %vm102 = vcmask 261120
  %v104 = vsel %vm102, %v88, 0
  %v107 = vsel %vm102, %v89, 0
  %109 = vmatprep.subr.bf16.mxu0 0
  %110 = vmatpush1.bf16.msra.mxu0 %v98
  %111 = vmatprep.subr.bf16.mxu0 0
  %112 = vmatpush1.bf16.msra.mxu0 %v99
  %113 = vmatprep.subr.bf16.mxu0 0
  %114 = vmatpush1.bf16.msra.mxu0 0
  %115 = vmatprep.subr.bf16.mxu0 0
  %116 = vmatpush1.bf16.msra.mxu0 0
  %117 = vmatprep.subr.bf16.mxu0 0
  %118 = vmatpush1.bf16.msra.mxu0 0
  %119 = vmatprep.subr.bf16.mxu0 0
  %120 = vmatpush1.bf16.msra.mxu0 0
  %121 = vmatprep.subr.bf16.mxu0 0
  %122 = vmatpush1.bf16.msra.mxu0 0
  %123 = vmatprep.subr.bf16.mxu0 0
  %124 = vmatpush1.bf16.msra.mxu0 0
  %125 = vmatprep.subr.bf16.mxu0 0
  %126 = vmatpush1.bf16.msra.mxu0 0
  %127 = vmatprep.subr.bf16.mxu0 0
  %128 = vmatpush1.bf16.msra.mxu0 0
  %129 = vmatprep.subr.bf16.mxu0 0
  %130 = vmatpush1.bf16.msra.mxu0 0
  %131 = vmatprep.subr.bf16.mxu0 0
  %132 = vmatpush1.bf16.msra.mxu0 0
  %133 = vmatprep.subr.bf16.mxu0 0
  %134 = vmatpush1.bf16.msra.mxu0 0
  %135 = vmatprep.subr.bf16.mxu0 0
  %136 = vmatpush1.bf16.msra.mxu0 0
  %137 = vmatprep.subr.bf16.mxu0 0
  %138 = vmatpush1.bf16.msra.mxu0 0
  %139 = vmatprep.subr.bf16.mxu0 0
  %140 = vmatpush1.bf16.msra.mxu0 0
  %141 = vmatprep.mubr.bf16.mxu0 0
  %142 = vmatmul.mubr.bf16.gmra.mrb[0].mxu0 %v104
  %v143 = vpop.f32.mrb[0].mxu0
  %v144 = vadd.f32 0.0, %v143
  %v145 = vpop.f32.mrb[0].mxu0
  %v146 = vpop.f32.mrb[0].mxu0
  %v147 = vadd.f32 0.0, %v146
  %v148 = vpop.f32.mrb[0].mxu0
  %149 = vmatprep.mubr.bf16.mxu0 0
  %150 = vmatmul.mubr.bf16.gmra.mrb[0].mxu0 %v107
  %v151 = vpop.f32.mrb[0].mxu0
  %v152 = vadd.f32 0.0, %v151
  %v153 = vpop.f32.mrb[0].mxu0
  %v154 = vpop.f32.mrb[0].mxu0
  %v155 = vadd.f32 0.0, %v154
  %v156 = vpop.f32.mrb[0].mxu0
  %157 = vdwg.mxu0
  %v162 = vunpack.c.l.b16 %v31
  %v163 = vunpack.c.l.b16 %v32
  %v164 = vunpack.c.l.b16 %v33
  %v165 = vunpack.c.l.b16 %v34
  %v166 = vpack.c.b16 %v163, %v162
  %v167 = vpack.c.b16 %v165, %v164
  %v172 = vunpack.c.l.b16 %v47
  %v173 = vunpack.c.l.b16 %v48
  %v174 = vunpack.c.l.b16 %v49
  %v175 = vunpack.c.l.b16 %v50
  %v176 = vpack.c.b16 %v173, %v172
  %v177 = vpack.c.b16 %v175, %v174
  %v181 = vsel %vm102, %v166, 0
  %v184 = vsel %vm102, %v167, 0
  %186 = vmatprep.subr.bf16.mxu0 0
  %187 = vmatpush1.bf16.msra.mxu0 %v176
  %188 = vmatprep.subr.bf16.mxu0 0
  %189 = vmatpush1.bf16.msra.mxu0 %v177
  %190 = vmatprep.subr.bf16.mxu0 0
  %191 = vmatpush1.bf16.msra.mxu0 0
  %192 = vmatprep.subr.bf16.mxu0 0
  %193 = vmatpush1.bf16.msra.mxu0 0
  %194 = vmatprep.subr.bf16.mxu0 0
  %195 = vmatpush1.bf16.msra.mxu0 0
  %196 = vmatprep.subr.bf16.mxu0 0
  %197 = vmatpush1.bf16.msra.mxu0 0
  %198 = vmatprep.subr.bf16.mxu0 0
  %199 = vmatpush1.bf16.msra.mxu0 0
  %200 = vmatprep.subr.bf16.mxu0 0
  %201 = vmatpush1.bf16.msra.mxu0 0
  %202 = vmatprep.subr.bf16.mxu0 0
  %203 = vmatpush1.bf16.msra.mxu0 0
  %204 = vmatprep.subr.bf16.mxu0 0
  %205 = vmatpush1.bf16.msra.mxu0 0
  %206 = vmatprep.subr.bf16.mxu0 0
  %207 = vmatpush1.bf16.msra.mxu0 0
  %208 = vmatprep.subr.bf16.mxu0 0
  %209 = vmatpush1.bf16.msra.mxu0 0
  %210 = vmatprep.subr.bf16.mxu0 0
  %211 = vmatpush1.bf16.msra.mxu0 0
  %212 = vmatprep.subr.bf16.mxu0 0
  %213 = vmatpush1.bf16.msra.mxu0 0
  %214 = vmatprep.subr.bf16.mxu0 0
  %215 = vmatpush1.bf16.msra.mxu0 0
  %216 = vmatprep.subr.bf16.mxu0 0
  %217 = vmatpush1.bf16.msra.mxu0 0
  %218 = vmatprep.mubr.bf16.mxu0 0
  %219 = vmatmul.mubr.bf16.gmra.mrb[0].mxu0 %v181
  %v220 = vpop.f32.mrb[0].mxu0
  %v221 = vadd.f32 0.0, %v220
  %v222 = vpop.f32.mrb[0].mxu0
  %v223 = vpop.f32.mrb[0].mxu0
  %v224 = vadd.f32 0.0, %v223
  %v225 = vpop.f32.mrb[0].mxu0
  %226 = vmatprep.mubr.bf16.mxu0 0
  %227 = vmatmul.mubr.bf16.gmra.mrb[0].mxu0 %v184
  %v228 = vpop.f32.mrb[0].mxu0
  %v229 = vadd.f32 0.0, %v228
  %v230 = vpop.f32.mrb[0].mxu0
  %v231 = vpop.f32.mrb[0].mxu0
  %v232 = vadd.f32 0.0, %v231
  %v233 = vpop.f32.mrb[0].mxu0
  %234 = vdwg.mxu0
  %v239 = vunpack.c.l.b16 %v35
  %v240 = vunpack.c.l.b16 %v36
  %v241 = vunpack.c.l.b16 %v37
  %v242 = vunpack.c.l.b16 %v38
  %v243 = vpack.c.b16 %v240, %v239
  %v244 = vpack.c.b16 %v242, %v241
  %v249 = vunpack.c.l.b16 %v51
  %v250 = vunpack.c.l.b16 %v52
  %v251 = vunpack.c.l.b16 %v53
  %v252 = vunpack.c.l.b16 %v54
  %v253 = vpack.c.b16 %v250, %v249
  %v254 = vpack.c.b16 %v252, %v251
  %v258 = vsel %vm102, %v243, 0
  %v261 = vsel %vm102, %v244, 0
  %263 = vmatprep.subr.bf16.mxu0 0
  %264 = vmatpush1.bf16.msra.mxu0 %v253
  %265 = vmatprep.subr.bf16.mxu0 0
  %266 = vmatpush1.bf16.msra.mxu0 %v254
  %267 = vmatprep.subr.bf16.mxu0 0
  %268 = vmatpush1.bf16.msra.mxu0 0
  %269 = vmatprep.subr.bf16.mxu0 0
  %270 = vmatpush1.bf16.msra.mxu0 0
  %271 = vmatprep.subr.bf16.mxu0 0
  %272 = vmatpush1.bf16.msra.mxu0 0
  %273 = vmatprep.subr.bf16.mxu0 0
  %274 = vmatpush1.bf16.msra.mxu0 0
  %275 = vmatprep.subr.bf16.mxu0 0
  %276 = vmatpush1.bf16.msra.mxu0 0
  %277 = vmatprep.subr.bf16.mxu0 0
  %278 = vmatpush1.bf16.msra.mxu0 0
  %279 = vmatprep.subr.bf16.mxu0 0
  %280 = vmatpush1.bf16.msra.mxu0 0
  %281 = vmatprep.subr.bf16.mxu0 0
  %282 = vmatpush1.bf16.msra.mxu0 0
  %283 = vmatprep.subr.bf16.mxu0 0
  %284 = vmatpush1.bf16.msra.mxu0 0
  %285 = vmatprep.subr.bf16.mxu0 0
  %286 = vmatpush1.bf16.msra.mxu0 0
  %287 = vmatprep.subr.bf16.mxu0 0
  %288 = vmatpush1.bf16.msra.mxu0 0
  %289 = vmatprep.subr.bf16.mxu0 0
  %290 = vmatpush1.bf16.msra.mxu0 0
  %291 = vmatprep.subr.bf16.mxu0 0
  %292 = vmatpush1.bf16.msra.mxu0 0
  %293 = vmatprep.subr.bf16.mxu0 0
  %294 = vmatpush1.bf16.msra.mxu0 0
  %295 = vmatprep.mubr.bf16.mxu0 0
  %296 = vmatmul.mubr.bf16.gmra.mrb[0].mxu0 %v258
  %v297 = vpop.f32.mrb[0].mxu0
  %v298 = vadd.f32 0.0, %v297
  %v299 = vpop.f32.mrb[0].mxu0
  %v300 = vpop.f32.mrb[0].mxu0
  %v301 = vadd.f32 0.0, %v300
  %v302 = vpop.f32.mrb[0].mxu0
  %303 = vmatprep.mubr.bf16.mxu0 0
  %304 = vmatmul.mubr.bf16.gmra.mrb[0].mxu0 %v261
  %v305 = vpop.f32.mrb[0].mxu0
  %v306 = vadd.f32 0.0, %v305
  %v307 = vpop.f32.mrb[0].mxu0
  %v308 = vpop.f32.mrb[0].mxu0
  %v309 = vadd.f32 0.0, %v308
  %v310 = vpop.f32.mrb[0].mxu0
  %311 = vdwg.mxu0
  %v316 = vunpack.c.l.b16 %v39
  %v317 = vunpack.c.l.b16 %v40
  %v318 = vunpack.c.l.b16 %v41
  %v319 = vunpack.c.l.b16 %v42
  %v320 = vpack.c.b16 %v317, %v316
  %v321 = vpack.c.b16 %v319, %v318
  %v326 = vunpack.c.l.b16 %v55
  %v327 = vunpack.c.l.b16 %v56
  %v328 = vunpack.c.l.b16 %v57
  %v329 = vunpack.c.l.b16 %v58
  %v330 = vpack.c.b16 %v327, %v326
  %v331 = vpack.c.b16 %v329, %v328
  %v335 = vsel %vm102, %v320, 0
  %v338 = vsel %vm102, %v321, 0
  %340 = vmatprep.subr.bf16.mxu0 0
  %341 = vmatpush1.bf16.msra.mxu0 %v330
  %342 = vmatprep.subr.bf16.mxu0 0
  %343 = vmatpush1.bf16.msra.mxu0 %v331
  %344 = vmatprep.subr.bf16.mxu0 0
  %345 = vmatpush1.bf16.msra.mxu0 0
  %346 = vmatprep.subr.bf16.mxu0 0
  %347 = vmatpush1.bf16.msra.mxu0 0
  %348 = vmatprep.subr.bf16.mxu0 0
  %349 = vmatpush1.bf16.msra.mxu0 0
  %350 = vmatprep.subr.bf16.mxu0 0
  %351 = vmatpush1.bf16.msra.mxu0 0
  %352 = vmatprep.subr.bf16.mxu0 0
  %353 = vmatpush1.bf16.msra.mxu0 0
  %354 = vmatprep.subr.bf16.mxu0 0
  %355 = vmatpush1.bf16.msra.mxu0 0
  %356 = vmatprep.subr.bf16.mxu0 0
  %357 = vmatpush1.bf16.msra.mxu0 0
  %358 = vmatprep.subr.bf16.mxu0 0
  %359 = vmatpush1.bf16.msra.mxu0 0
  %360 = vmatprep.subr.bf16.mxu0 0
  %361 = vmatpush1.bf16.msra.mxu0 0
  %362 = vmatprep.subr.bf16.mxu0 0
  %363 = vmatpush1.bf16.msra.mxu0 0
  %364 = vmatprep.subr.bf16.mxu0 0
  %365 = vmatpush1.bf16.msra.mxu0 0
  %366 = vmatprep.subr.bf16.mxu0 0
  %367 = vmatpush1.bf16.msra.mxu0 0
  %368 = vmatprep.subr.bf16.mxu0 0
  %369 = vmatpush1.bf16.msra.mxu0 0
  %370 = vmatprep.subr.bf16.mxu0 0
  %371 = vmatpush1.bf16.msra.mxu0 0
  %372 = vmatprep.mubr.bf16.mxu0 0
  %373 = vmatmul.mubr.bf16.gmra.mrb[0].mxu0 %v335
  %v374 = vpop.f32.mrb[0].mxu0
  %v375 = vadd.f32 0.0, %v374
  %v376 = vpop.f32.mrb[0].mxu0
  %v377 = vpop.f32.mrb[0].mxu0
  %v378 = vadd.f32 0.0, %v377
  %v379 = vpop.f32.mrb[0].mxu0
  %380 = vmatprep.mubr.bf16.mxu0 0
  %381 = vmatmul.mubr.bf16.gmra.mrb[0].mxu0 %v338
  %v382 = vpop.f32.mrb[0].mxu0
  %v383 = vadd.f32 0.0, %v382
  %v384 = vpop.f32.mrb[0].mxu0
  %v385 = vpop.f32.mrb[0].mxu0
  %v386 = vadd.f32 0.0, %v385
  %v387 = vpop.f32.mrb[0].mxu0
  %388 = vdwg.mxu0
  %v389 = vpack.c.bf16 %v147, %v144
  %v390 = vpack.c.bf16 %v155, %v152
  %v391 = vpack.c.bf16 %v224, %v221
  %v392 = vpack.c.bf16 %v232, %v229
  %v393 = vpack.c.bf16 %v301, %v298
  %v394 = vpack.c.bf16 %v309, %v306
  %v395 = vpack.c.bf16 %v378, %v375
  %v396 = vpack.c.bf16 %v386, %v383
  %v397 = vlaneseq
  %v398 = vshrl.u32 %v397, 7
  %v399 = vsub.s32 0, %v398
  %v400 = vrot.slane %v59, %v399
  %v405 = vunpack.c.l.b16 %v60
  %v406 = vunpack.c.l.b16 %v61
  %v407 = vunpack.c.l.b16 %v62
  %v408 = vunpack.c.l.b16 %v63
  %v409 = vpack.c.b16 %v406, %v405
  %v410 = vpack.c.b16 %v408, %v407
  %v414 = vsel %vm102, %v389, 0
  %v417 = vsel %vm102, %v390, 0
  %v420 = vsel %vm102, %v391, 0
  %v423 = vsel %vm102, %v392, 0
  %v426 = vsel %vm102, %v393, 0
  %v429 = vsel %vm102, %v394, 0
  %v432 = vsel %vm102, %v395, 0
  %v435 = vsel %vm102, %v396, 0
  %437 = vmatprep.subr.bf16.mxu0 0
  %438 = vmatpush1.bf16.msra.mxu0 %v409
  %439 = vmatprep.subr.bf16.mxu0 0
  %440 = vmatpush1.bf16.msra.mxu0 %v410
  %441 = vmatprep.subr.bf16.mxu0 0
  %442 = vmatpush1.bf16.msra.mxu0 0
  %443 = vmatprep.subr.bf16.mxu0 0
  %444 = vmatpush1.bf16.msra.mxu0 0
  %445 = vmatprep.subr.bf16.mxu0 0
  %446 = vmatpush1.bf16.msra.mxu0 0
  %447 = vmatprep.subr.bf16.mxu0 0
  %448 = vmatpush1.bf16.msra.mxu0 0
  %449 = vmatprep.subr.bf16.mxu0 0
  %450 = vmatpush1.bf16.msra.mxu0 0
  %451 = vmatprep.subr.bf16.mxu0 0
  %452 = vmatpush1.bf16.msra.mxu0 0
  %453 = vmatprep.subr.bf16.mxu0 0
  %454 = vmatpush1.bf16.msra.mxu0 0
  %455 = vmatprep.subr.bf16.mxu0 0
  %456 = vmatpush1.bf16.msra.mxu0 0
  %457 = vmatprep.subr.bf16.mxu0 0
  %458 = vmatpush1.bf16.msra.mxu0 0
  %459 = vmatprep.subr.bf16.mxu0 0
  %460 = vmatpush1.bf16.msra.mxu0 0
  %461 = vmatprep.subr.bf16.mxu0 0
  %462 = vmatpush1.bf16.msra.mxu0 0
  %463 = vmatprep.subr.bf16.mxu0 0
  %464 = vmatpush1.bf16.msra.mxu0 0
  %465 = vmatprep.subr.bf16.mxu0 0
  %466 = vmatpush1.bf16.msra.mxu0 0
  %467 = vmatprep.subr.bf16.mxu0 0
  %468 = vmatpush1.bf16.msra.mxu0 0
  %469 = vmatprep.mubr.bf16.mxu0 0
  %470 = vmatmul.mubr.bf16.gmra.mrb[0].mxu0 %v414
  %v471 = vpop.f32.mrb[0].mxu0
  %v472 = vadd.f32 %v400, %v471
  %v473 = vpop.f32.mrb[0].mxu0
  %v474 = vpop.f32.mrb[0].mxu0
  %v475 = vadd.f32 %v400, %v474
  %v476 = vpop.f32.mrb[0].mxu0
  %477 = vmatprep.mubr.bf16.mxu0 0
  %478 = vmatmul.mubr.bf16.gmra.mrb[0].mxu0 %v417
  %v479 = vpop.f32.mrb[0].mxu0
  %v480 = vadd.f32 %v400, %v479
  %v481 = vpop.f32.mrb[0].mxu0
  %v482 = vpop.f32.mrb[0].mxu0
  %v483 = vadd.f32 %v400, %v482
  %v484 = vpop.f32.mrb[0].mxu0
  %485 = vmatprep.mubr.bf16.mxu0 0
  %486 = vmatmul.mubr.bf16.gmra.mrb[0].mxu0 %v420
  %v487 = vpop.f32.mrb[0].mxu0
  %v488 = vadd.f32 %v400, %v487
  %v489 = vpop.f32.mrb[0].mxu0
  %v490 = vpop.f32.mrb[0].mxu0
  %v491 = vadd.f32 %v400, %v490
  %v492 = vpop.f32.mrb[0].mxu0
  %493 = vmatprep.mubr.bf16.mxu0 0
  %494 = vmatmul.mubr.bf16.gmra.mrb[0].mxu0 %v423
  %v495 = vpop.f32.mrb[0].mxu0
  %v496 = vadd.f32 %v400, %v495
  %v497 = vpop.f32.mrb[0].mxu0
  %v498 = vpop.f32.mrb[0].mxu0
  %v499 = vadd.f32 %v400, %v498
  %v500 = vpop.f32.mrb[0].mxu0
  %501 = vmatprep.mubr.bf16.mxu0 0
  %502 = vmatmul.mubr.bf16.gmra.mrb[0].mxu0 %v426
  %v503 = vpop.f32.mrb[0].mxu0
  %v504 = vadd.f32 %v400, %v503
  %v505 = vpop.f32.mrb[0].mxu0
  %v506 = vpop.f32.mrb[0].mxu0
  %v507 = vadd.f32 %v400, %v506
  %v508 = vpop.f32.mrb[0].mxu0
  %509 = vmatprep.mubr.bf16.mxu0 0
  %510 = vmatmul.mubr.bf16.gmra.mrb[0].mxu0 %v429
  %v511 = vpop.f32.mrb[0].mxu0
  %v512 = vadd.f32 %v400, %v511
  %v513 = vpop.f32.mrb[0].mxu0
  %v514 = vpop.f32.mrb[0].mxu0
  %v515 = vadd.f32 %v400, %v514
  %v516 = vpop.f32.mrb[0].mxu0
  %517 = vmatprep.mubr.bf16.mxu0 0
  %518 = vmatmul.mubr.bf16.gmra.mrb[0].mxu0 %v432
  %v519 = vpop.f32.mrb[0].mxu0
  %v520 = vadd.f32 %v400, %v519
  %v521 = vpop.f32.mrb[0].mxu0
  %v522 = vpop.f32.mrb[0].mxu0
  %v523 = vadd.f32 %v400, %v522
  %v524 = vpop.f32.mrb[0].mxu0
  %525 = vmatprep.mubr.bf16.mxu0 0
  %526 = vmatmul.mubr.bf16.gmra.mrb[0].mxu0 %v435
  %v527 = vpop.f32.mrb[0].mxu0
  %v528 = vadd.f32 %v400, %v527
  %v529 = vpop.f32.mrb[0].mxu0
  %v530 = vpop.f32.mrb[0].mxu0
  %v531 = vadd.f32 %v400, %v530
  %v532 = vpop.f32.mrb[0].mxu0
  %533 = vdwg.mxu0
  %v534 = vmax.f32 %v472, 0.0
  %v535 = vmax.f32 %v475, 0.0
  %v536 = vmax.f32 %v480, 0.0
  %v537 = vmax.f32 %v483, 0.0
  %v538 = vmax.f32 %v488, 0.0
  %v539 = vmax.f32 %v491, 0.0
  %v540 = vmax.f32 %v496, 0.0
  %v541 = vmax.f32 %v499, 0.0
  %v542 = vmax.f32 %v504, 0.0
  %v543 = vmax.f32 %v507, 0.0
  %v544 = vmax.f32 %v512, 0.0
  %v545 = vmax.f32 %v515, 0.0
  %v546 = vmax.f32 %v520, 0.0
  %v547 = vmax.f32 %v523, 0.0
  %v548 = vmax.f32 %v528, 0.0
  %v549 = vmax.f32 %v531, 0.0
  %v550 = vpack.c.bf16 %v535, %v534
  %v551 = vpack.c.bf16 %v537, %v536
  %v552 = vpack.c.bf16 %v539, %v538
  %v553 = vpack.c.bf16 %v541, %v540
  %v554 = vpack.c.bf16 %v543, %v542
  %v555 = vpack.c.bf16 %v545, %v544
  %v556 = vpack.c.bf16 %v547, %v546
  %v557 = vpack.c.bf16 %v549, %v548
  %v558 = vlaneseq
  %v559 = vshrl.u32 %v558, 7
  %v560 = vsub.s32 1, %v559
  %v561 = vrot.slane %v59, %v560
  %v578 = vunpack.c.l.b16 %v64
  %v579 = vunpack.c.l.b16 %v65
  %v580 = vunpack.c.l.b16 %v66
  %v581 = vunpack.c.l.b16 %v67
  %v582 = vunpack.c.l.b16 %v68
  %v583 = vunpack.c.l.b16 %v69
  %v584 = vunpack.c.l.b16 %v70
  %v585 = vunpack.c.l.b16 %v71
  %v586 = vunpack.c.l.b16 %v72
  %v587 = vunpack.c.l.b16 %v73
  %v588 = vunpack.c.l.b16 %v74
  %v589 = vunpack.c.l.b16 %v75
  %v590 = vunpack.c.l.b16 %v76
  %v591 = vunpack.c.l.b16 %v77
  %v592 = vunpack.c.l.b16 %v78
  %v593 = vunpack.c.l.b16 %v79
  %v594 = vpack.c.b16 %v579, %v578
  %v595 = vpack.c.b16 %v581, %v580
  %v596 = vpack.c.b16 %v583, %v582
  %v597 = vpack.c.b16 %v585, %v584
  %v598 = vpack.c.b16 %v587, %v586
  %v599 = vpack.c.b16 %v589, %v588
  %v600 = vpack.c.b16 %v591, %v590
  %v601 = vpack.c.b16 %v593, %v592
  %610 = vmatprep.subr.bf16.mxu0 0
  %611 = vmatpush1.bf16.msra.mxu0 %v594
  %612 = vmatprep.subr.bf16.mxu0 0
  %613 = vmatpush1.bf16.msra.mxu0 %v595
  %614 = vmatprep.subr.bf16.mxu0 0
  %615 = vmatpush1.bf16.msra.mxu0 %v596
  %616 = vmatprep.subr.bf16.mxu0 0
  %617 = vmatpush1.bf16.msra.mxu0 %v597
  %618 = vmatprep.subr.bf16.mxu0 0
  %619 = vmatpush1.bf16.msra.mxu0 %v598
  %620 = vmatprep.subr.bf16.mxu0 0
  %621 = vmatpush1.bf16.msra.mxu0 %v599
  %622 = vmatprep.subr.bf16.mxu0 0
  %623 = vmatpush1.bf16.msra.mxu0 %v600
  %624 = vmatprep.subr.bf16.mxu0 0
  %625 = vmatpush1.bf16.msra.mxu0 %v601
  %626 = vmatprep.subr.bf16.mxu0 0
  %627 = vmatpush1.bf16.msra.mxu0 0
  %628 = vmatprep.subr.bf16.mxu0 0
  %629 = vmatpush1.bf16.msra.mxu0 0
  %630 = vmatprep.subr.bf16.mxu0 0
  %631 = vmatpush1.bf16.msra.mxu0 0
  %632 = vmatprep.subr.bf16.mxu0 0
  %633 = vmatpush1.bf16.msra.mxu0 0
  %634 = vmatprep.subr.bf16.mxu0 0
  %635 = vmatpush1.bf16.msra.mxu0 0
  %636 = vmatprep.subr.bf16.mxu0 0
  %637 = vmatpush1.bf16.msra.mxu0 0
  %638 = vmatprep.subr.bf16.mxu0 0
  %639 = vmatpush1.bf16.msra.mxu0 0
  %640 = vmatprep.subr.bf16.mxu0 0
  %641 = vmatpush1.bf16.msra.mxu0 0
  %642 = vmatprep.mubr.bf16.mxu0 0
  %643 = vmatmul.mubr.bf16.gmra.mrb[0].mxu0 %v550
  %v644 = vpop.f32.mrb[0].mxu0
  %v645 = vadd.f32 %v561, %v644
  %v646 = vpop.f32.mrb[0].mxu0
  %v647 = vpop.f32.mrb[0].mxu0
  %v648 = vadd.f32 %v561, %v647
  %v649 = vpop.f32.mrb[0].mxu0
  %650 = vmatprep.mubr.bf16.mxu0 0
  %651 = vmatmul.mubr.bf16.gmra.mrb[0].mxu0 %v551
  %v652 = vpop.f32.mrb[0].mxu0
  %v653 = vadd.f32 %v561, %v652
  %v654 = vpop.f32.mrb[0].mxu0
  %v655 = vpop.f32.mrb[0].mxu0
  %v656 = vadd.f32 %v561, %v655
  %v657 = vpop.f32.mrb[0].mxu0
  %658 = vmatprep.mubr.bf16.mxu0 0
  %659 = vmatmul.mubr.bf16.gmra.mrb[0].mxu0 %v552
  %v660 = vpop.f32.mrb[0].mxu0
  %v661 = vadd.f32 %v561, %v660
  %v662 = vpop.f32.mrb[0].mxu0
  %v663 = vpop.f32.mrb[0].mxu0
  %v664 = vadd.f32 %v561, %v663
  %v665 = vpop.f32.mrb[0].mxu0
  %666 = vmatprep.mubr.bf16.mxu0 0
  %667 = vmatmul.mubr.bf16.gmra.mrb[0].mxu0 %v553
  %v668 = vpop.f32.mrb[0].mxu0
  %v669 = vadd.f32 %v561, %v668
  %v670 = vpop.f32.mrb[0].mxu0
  %v671 = vpop.f32.mrb[0].mxu0
  %v672 = vadd.f32 %v561, %v671
  %v673 = vpop.f32.mrb[0].mxu0
  %674 = vmatprep.mubr.bf16.mxu0 0
  %675 = vmatmul.mubr.bf16.gmra.mrb[0].mxu0 %v554
  %v676 = vpop.f32.mrb[0].mxu0
  %v677 = vadd.f32 %v561, %v676
  %v678 = vpop.f32.mrb[0].mxu0
  %v679 = vpop.f32.mrb[0].mxu0
  %v680 = vadd.f32 %v561, %v679
  %v681 = vpop.f32.mrb[0].mxu0
  %682 = vmatprep.mubr.bf16.mxu0 0
  %683 = vmatmul.mubr.bf16.gmra.mrb[0].mxu0 %v555
  %v684 = vpop.f32.mrb[0].mxu0
  %v685 = vadd.f32 %v561, %v684
  %v686 = vpop.f32.mrb[0].mxu0
  %v687 = vpop.f32.mrb[0].mxu0
  %v688 = vadd.f32 %v561, %v687
  %v689 = vpop.f32.mrb[0].mxu0
  %690 = vmatprep.mubr.bf16.mxu0 0
  %691 = vmatmul.mubr.bf16.gmra.mrb[0].mxu0 %v556
  %v692 = vpop.f32.mrb[0].mxu0
  %v693 = vadd.f32 %v561, %v692
  %v694 = vpop.f32.mrb[0].mxu0
  %v695 = vpop.f32.mrb[0].mxu0
  %v696 = vadd.f32 %v561, %v695
  %v697 = vpop.f32.mrb[0].mxu0
  %698 = vmatprep.mubr.bf16.mxu0 0
  %699 = vmatmul.mubr.bf16.gmra.mrb[0].mxu0 %v557
  %v700 = vpop.f32.mrb[0].mxu0
  %v701 = vadd.f32 %v561, %v700
  %v702 = vpop.f32.mrb[0].mxu0
  %v703 = vpop.f32.mrb[0].mxu0
  %v704 = vadd.f32 %v561, %v703
  %v705 = vpop.f32.mrb[0].mxu0
  %706 = vdwg.mxu0
  %v707 = vmax.f32 %v645, 0.0
  %v708 = vmax.f32 %v648, 0.0
  %v709 = vmax.f32 %v653, 0.0
  %v710 = vmax.f32 %v656, 0.0
  %v711 = vmax.f32 %v661, 0.0
  %v712 = vmax.f32 %v664, 0.0
  %v713 = vmax.f32 %v669, 0.0
  %v714 = vmax.f32 %v672, 0.0
  %v715 = vmax.f32 %v677, 0.0
  %v716 = vmax.f32 %v680, 0.0
  %v717 = vmax.f32 %v685, 0.0
  %v718 = vmax.f32 %v688, 0.0
  %v719 = vmax.f32 %v693, 0.0
  %v720 = vmax.f32 %v696, 0.0
  %v721 = vmax.f32 %v701, 0.0
  %v722 = vmax.f32 %v704, 0.0
  %v723 = vpack.c.bf16 %v708, %v707
  %v724 = vpack.c.bf16 %v710, %v709
  %v725 = vpack.c.bf16 %v712, %v711
  %v726 = vpack.c.bf16 %v714, %v713
  %v727 = vpack.c.bf16 %v716, %v715
  %v728 = vpack.c.bf16 %v718, %v717
  %v729 = vpack.c.bf16 %v720, %v719
  %v730 = vpack.c.bf16 %v722, %v721
  %s731 = scalar_lea.vmem %s3, 64
  %v732 = vld [vmem:[%s731] sm:$0xf]
  %v733 = vld [vmem:[%s731 + $0x4] sm:$0xf]
  %v734 = vld [vmem:[%s731 + $0x8] sm:$0xf]
  %v735 = vld [vmem:[%s731 + $0xc] sm:$0xf]
  %v736 = vld [vmem:[%s731 + $0x10] sm:$0xf]
  %v737 = vld [vmem:[%s731 + $0x14] sm:$0xf]
  %v738 = vld [vmem:[%s731 + $0x18] sm:$0xf]
  %v739 = vld [vmem:[%s731 + $0x1c] sm:$0xf]
  %v740 = vld [vmem:[%s731 + $0x20] sm:$0xf]
  %v741 = vld [vmem:[%s731 + $0x24] sm:$0xf]
  %v742 = vld [vmem:[%s731 + $0x28] sm:$0xf]
  %v743 = vld [vmem:[%s731 + $0x2c] sm:$0xf]
  %v744 = vld [vmem:[%s731 + $0x30] sm:$0xf]
  %v745 = vld [vmem:[%s731 + $0x34] sm:$0xf]
  %v746 = vld [vmem:[%s731 + $0x38] sm:$0xf]
  %v747 = vld [vmem:[%s731 + $0x3c] sm:$0xf]
  %s748 = scalar_lea.vmem %s3, 128
  %v749 = vld [vmem:[%s748] sm:$0xf]
  %v750 = vld [vmem:[%s748 + $0x4] sm:$0xf]
  %v751 = vld [vmem:[%s748 + $0x8] sm:$0xf]
  %v752 = vld [vmem:[%s748 + $0xc] sm:$0xf]
  %v753 = vld [vmem:[%s748 + $0x10] sm:$0xf]
  %v754 = vld [vmem:[%s748 + $0x14] sm:$0xf]
  %v755 = vld [vmem:[%s748 + $0x18] sm:$0xf]
  %v756 = vld [vmem:[%s748 + $0x1c] sm:$0xf]
  %v757 = vld [vmem:[%s748 + $0x20] sm:$0xf]
  %v758 = vld [vmem:[%s748 + $0x24] sm:$0xf]
  %v759 = vld [vmem:[%s748 + $0x28] sm:$0xf]
  %v760 = vld [vmem:[%s748 + $0x2c] sm:$0xf]
  %v761 = vld [vmem:[%s748 + $0x30] sm:$0xf]
  %v762 = vld [vmem:[%s748 + $0x34] sm:$0xf]
  %v763 = vld [vmem:[%s748 + $0x38] sm:$0xf]
  %v764 = vld [vmem:[%s748 + $0x3c] sm:$0xf]
  %765 = vmatprep.subr.bf16.mxu0 0
  %766 = vmatpush1.bf16.msra.mxu0 %v723
  %767 = vmatprep.subr.bf16.mxu0 0
  %768 = vmatpush1.bf16.msra.mxu0 %v724
  %769 = vmatprep.subr.bf16.mxu0 0
  %770 = vmatpush1.bf16.msra.mxu0 0
  %771 = vmatprep.subr.bf16.mxu0 0
  %772 = vmatpush1.bf16.msra.mxu0 0
  %773 = vmatprep.subr.bf16.mxu0 0
  %774 = vmatpush1.bf16.msra.mxu0 0
  %775 = vmatprep.subr.bf16.mxu0 0
  %776 = vmatpush1.bf16.msra.mxu0 0
  %777 = vmatprep.subr.bf16.mxu0 0
  %778 = vmatpush1.bf16.msra.mxu0 0
  %779 = vmatprep.subr.bf16.mxu0 0
  %780 = vmatpush1.bf16.msra.mxu0 0
  %781 = vmatprep.subr.bf16.mxu0 0
  %782 = vmatpush1.bf16.msra.mxu0 0
  %783 = vmatprep.subr.bf16.mxu0 0
  %784 = vmatpush1.bf16.msra.mxu0 0
  %785 = vmatprep.subr.bf16.mxu0 0
  %786 = vmatpush1.bf16.msra.mxu0 0
  %787 = vmatprep.subr.bf16.mxu0 0
  %788 = vmatpush1.bf16.msra.mxu0 0
  %789 = vmatprep.subr.bf16.mxu0 0
  %790 = vmatpush1.bf16.msra.mxu0 0
  %791 = vmatprep.subr.bf16.mxu0 0
  %792 = vmatpush1.bf16.msra.mxu0 0
  %793 = vmatprep.subr.bf16.mxu0 0
  %794 = vmatpush1.bf16.msra.mxu0 0
  %795 = vmatprep.subr.bf16.mxu0 0
  %796 = vmatpush1.bf16.msra.mxu0 0
  %797 = vmatprep.mubr.bf16.mxu0 0
  %798 = vmatmul.mubr.bf16.gmra.mrb[0].mxu0 %v104
  %v799 = vpop.f32.mrb[0].mxu0
  %v800 = vadd.f32 0.0, %v799
  %v801 = vpop.f32.mrb[0].mxu0
  %v802 = vpop.f32.mrb[0].mxu0
  %v803 = vadd.f32 0.0, %v802
  %v804 = vpop.f32.mrb[0].mxu0
  %805 = vmatprep.mubr.bf16.mxu0 0
  %806 = vmatmul.mubr.bf16.gmra.mrb[0].mxu0 %v107
  %v807 = vpop.f32.mrb[0].mxu0
  %v808 = vadd.f32 0.0, %v807
  %v809 = vpop.f32.mrb[0].mxu0
  %v810 = vpop.f32.mrb[0].mxu0
  %v811 = vadd.f32 0.0, %v810
  %v812 = vpop.f32.mrb[0].mxu0
  %813 = vdwg.mxu0
  %814 = vmatprep.subr.bf16.mxu0 0
  %815 = vmatpush1.bf16.msra.mxu0 %v725
  %816 = vmatprep.subr.bf16.mxu0 0
  %817 = vmatpush1.bf16.msra.mxu0 %v726
  %818 = vmatprep.subr.bf16.mxu0 0
  %819 = vmatpush1.bf16.msra.mxu0 0
  %820 = vmatprep.subr.bf16.mxu0 0
  %821 = vmatpush1.bf16.msra.mxu0 0
  %822 = vmatprep.subr.bf16.mxu0 0
  %823 = vmatpush1.bf16.msra.mxu0 0
  %824 = vmatprep.subr.bf16.mxu0 0
  %825 = vmatpush1.bf16.msra.mxu0 0
  %826 = vmatprep.subr.bf16.mxu0 0
  %827 = vmatpush1.bf16.msra.mxu0 0
  %828 = vmatprep.subr.bf16.mxu0 0
  %829 = vmatpush1.bf16.msra.mxu0 0
  %830 = vmatprep.subr.bf16.mxu0 0
  %831 = vmatpush1.bf16.msra.mxu0 0
  %832 = vmatprep.subr.bf16.mxu0 0
  %833 = vmatpush1.bf16.msra.mxu0 0
  %834 = vmatprep.subr.bf16.mxu0 0
  %835 = vmatpush1.bf16.msra.mxu0 0
  %836 = vmatprep.subr.bf16.mxu0 0
  %837 = vmatpush1.bf16.msra.mxu0 0
  %838 = vmatprep.subr.bf16.mxu0 0
  %839 = vmatpush1.bf16.msra.mxu0 0
  %840 = vmatprep.subr.bf16.mxu0 0
  %841 = vmatpush1.bf16.msra.mxu0 0
  %842 = vmatprep.subr.bf16.mxu0 0
  %843 = vmatpush1.bf16.msra.mxu0 0
  %844 = vmatprep.subr.bf16.mxu0 0
  %845 = vmatpush1.bf16.msra.mxu0 0
  %846 = vmatprep.mubr.bf16.mxu0 0
  %847 = vmatmul.mubr.bf16.gmra.mrb[0].mxu0 %v181
  %v848 = vpop.f32.mrb[0].mxu0
  %v849 = vadd.f32 0.0, %v848
  %v850 = vpop.f32.mrb[0].mxu0
  %v851 = vpop.f32.mrb[0].mxu0
  %v852 = vadd.f32 0.0, %v851
  %v853 = vpop.f32.mrb[0].mxu0
  %854 = vmatprep.mubr.bf16.mxu0 0
  %855 = vmatmul.mubr.bf16.gmra.mrb[0].mxu0 %v184
  %v856 = vpop.f32.mrb[0].mxu0
  %v857 = vadd.f32 0.0, %v856
  %v858 = vpop.f32.mrb[0].mxu0
  %v859 = vpop.f32.mrb[0].mxu0
  %v860 = vadd.f32 0.0, %v859
  %v861 = vpop.f32.mrb[0].mxu0
  %862 = vdwg.mxu0
  %863 = vmatprep.subr.bf16.mxu0 0
  %864 = vmatpush1.bf16.msra.mxu0 %v727
  %865 = vmatprep.subr.bf16.mxu0 0
  %866 = vmatpush1.bf16.msra.mxu0 %v728
  %867 = vmatprep.subr.bf16.mxu0 0
  %868 = vmatpush1.bf16.msra.mxu0 0
  %869 = vmatprep.subr.bf16.mxu0 0
  %870 = vmatpush1.bf16.msra.mxu0 0
  %871 = vmatprep.subr.bf16.mxu0 0
  %872 = vmatpush1.bf16.msra.mxu0 0
  %873 = vmatprep.subr.bf16.mxu0 0
  %874 = vmatpush1.bf16.msra.mxu0 0
  %875 = vmatprep.subr.bf16.mxu0 0
  %876 = vmatpush1.bf16.msra.mxu0 0
  %877 = vmatprep.subr.bf16.mxu0 0
  %878 = vmatpush1.bf16.msra.mxu0 0
  %879 = vmatprep.subr.bf16.mxu0 0
  %880 = vmatpush1.bf16.msra.mxu0 0
  %881 = vmatprep.subr.bf16.mxu0 0
  %882 = vmatpush1.bf16.msra.mxu0 0
  %883 = vmatprep.subr.bf16.mxu0 0
  %884 = vmatpush1.bf16.msra.mxu0 0
  %885 = vmatprep.subr.bf16.mxu0 0
  %886 = vmatpush1.bf16.msra.mxu0 0
  %887 = vmatprep.subr.bf16.mxu0 0
  %888 = vmatpush1.bf16.msra.mxu0 0
  %889 = vmatprep.subr.bf16.mxu0 0
  %890 = vmatpush1.bf16.msra.mxu0 0
  %891 = vmatprep.subr.bf16.mxu0 0
  %892 = vmatpush1.bf16.msra.mxu0 0
  %893 = vmatprep.subr.bf16.mxu0 0
  %894 = vmatpush1.bf16.msra.mxu0 0
  %895 = vmatprep.mubr.bf16.mxu0 0
  %896 = vmatmul.mubr.bf16.gmra.mrb[0].mxu0 %v258
  %v897 = vpop.f32.mrb[0].mxu0
  %v898 = vadd.f32 0.0, %v897
  %v899 = vpop.f32.mrb[0].mxu0
  %v900 = vpop.f32.mrb[0].mxu0
  %v901 = vadd.f32 0.0, %v900
  %v902 = vpop.f32.mrb[0].mxu0
  %903 = vmatprep.mubr.bf16.mxu0 0
  %904 = vmatmul.mubr.bf16.gmra.mrb[0].mxu0 %v261
  %v905 = vpop.f32.mrb[0].mxu0
  %v906 = vadd.f32 0.0, %v905
  %v907 = vpop.f32.mrb[0].mxu0
  %v908 = vpop.f32.mrb[0].mxu0
  %v909 = vadd.f32 0.0, %v908
  %v910 = vpop.f32.mrb[0].mxu0
  %911 = vdwg.mxu0
  %912 = vmatprep.subr.bf16.mxu0 0
  %913 = vmatpush1.bf16.msra.mxu0 %v729
  %914 = vmatprep.subr.bf16.mxu0 0
  %915 = vmatpush1.bf16.msra.mxu0 %v730
  %916 = vmatprep.subr.bf16.mxu0 0
  %917 = vmatpush1.bf16.msra.mxu0 0
  %918 = vmatprep.subr.bf16.mxu0 0
  %919 = vmatpush1.bf16.msra.mxu0 0
  %920 = vmatprep.subr.bf16.mxu0 0
  %921 = vmatpush1.bf16.msra.mxu0 0
  %922 = vmatprep.subr.bf16.mxu0 0
  %923 = vmatpush1.bf16.msra.mxu0 0
  %924 = vmatprep.subr.bf16.mxu0 0
  %925 = vmatpush1.bf16.msra.mxu0 0
  %926 = vmatprep.subr.bf16.mxu0 0
  %927 = vmatpush1.bf16.msra.mxu0 0
  %928 = vmatprep.subr.bf16.mxu0 0
  %929 = vmatpush1.bf16.msra.mxu0 0
  %930 = vmatprep.subr.bf16.mxu0 0
  %931 = vmatpush1.bf16.msra.mxu0 0
  %932 = vmatprep.subr.bf16.mxu0 0
  %933 = vmatpush1.bf16.msra.mxu0 0
  %934 = vmatprep.subr.bf16.mxu0 0
  %935 = vmatpush1.bf16.msra.mxu0 0
  %936 = vmatprep.subr.bf16.mxu0 0
  %937 = vmatpush1.bf16.msra.mxu0 0
  %938 = vmatprep.subr.bf16.mxu0 0
  %939 = vmatpush1.bf16.msra.mxu0 0
  %940 = vmatprep.subr.bf16.mxu0 0
  %941 = vmatpush1.bf16.msra.mxu0 0
  %942 = vmatprep.subr.bf16.mxu0 0
  %943 = vmatpush1.bf16.msra.mxu0 0
  %944 = vmatprep.mubr.bf16.mxu0 0
  %945 = vmatmul.mubr.bf16.gmra.mrb[0].mxu0 %v335
  %v946 = vpop.f32.mrb[0].mxu0
  %v947 = vadd.f32 0.0, %v946
  %v948 = vpop.f32.mrb[0].mxu0
  %v949 = vpop.f32.mrb[0].mxu0
  %v950 = vadd.f32 0.0, %v949
  %v951 = vpop.f32.mrb[0].mxu0
  %952 = vmatprep.mubr.bf16.mxu0 0
  %953 = vmatmul.mubr.bf16.gmra.mrb[0].mxu0 %v338
  %v954 = vpop.f32.mrb[0].mxu0
  %v955 = vadd.f32 0.0, %v954
  %v956 = vpop.f32.mrb[0].mxu0
  %v957 = vpop.f32.mrb[0].mxu0
  %v958 = vadd.f32 0.0, %v957
  %v959 = vpop.f32.mrb[0].mxu0
  %960 = vdwg.mxu0
  %v961 = vpack.c.bf16 %v803, %v800
  %v962 = vpack.c.bf16 %v811, %v808
  %v963 = vpack.c.bf16 %v852, %v849
  %v964 = vpack.c.bf16 %v860, %v857
  %v965 = vpack.c.bf16 %v901, %v898
  %v966 = vpack.c.bf16 %v909, %v906
  %v967 = vpack.c.bf16 %v950, %v947
  %v968 = vpack.c.bf16 %v958, %v955
  %v969 = vlaneseq
  %v970 = vshrl.u32 %v969, 7
  %v971 = vsub.s32 2, %v970
  %v972 = vrot.slane %v59, %v971
  %v989 = vunpack.c.l.b16 %v732
  %v990 = vunpack.c.l.b16 %v733
  %v991 = vunpack.c.l.b16 %v734
  %v992 = vunpack.c.l.b16 %v735
  %v993 = vunpack.c.l.b16 %v736
  %v994 = vunpack.c.l.b16 %v737
  %v995 = vunpack.c.l.b16 %v738
  %v996 = vunpack.c.l.b16 %v739
  %v997 = vunpack.c.l.b16 %v740
  %v998 = vunpack.c.l.b16 %v741
  %v999 = vunpack.c.l.b16 %v742
  %v1000 = vunpack.c.l.b16 %v743
  %v1001 = vunpack.c.l.b16 %v744
  %v1002 = vunpack.c.l.b16 %v745
  %v1003 = vunpack.c.l.b16 %v746
  %v1004 = vunpack.c.l.b16 %v747
  %v1005 = vpack.c.b16 %v990, %v989
  %v1006 = vpack.c.b16 %v992, %v991
  %v1007 = vpack.c.b16 %v994, %v993
  %v1008 = vpack.c.b16 %v996, %v995
  %v1009 = vpack.c.b16 %v998, %v997
  %v1010 = vpack.c.b16 %v1000, %v999
  %v1011 = vpack.c.b16 %v1002, %v1001
  %v1012 = vpack.c.b16 %v1004, %v1003
  %1021 = vmatprep.subr.bf16.mxu0 0
  %1022 = vmatpush1.bf16.msra.mxu0 %v1005
  %1023 = vmatprep.subr.bf16.mxu0 0
  %1024 = vmatpush1.bf16.msra.mxu0 %v1006
  %1025 = vmatprep.subr.bf16.mxu0 0
  %1026 = vmatpush1.bf16.msra.mxu0 %v1007
  %1027 = vmatprep.subr.bf16.mxu0 0
  %1028 = vmatpush1.bf16.msra.mxu0 %v1008
  %1029 = vmatprep.subr.bf16.mxu0 0
  %1030 = vmatpush1.bf16.msra.mxu0 %v1009
  %1031 = vmatprep.subr.bf16.mxu0 0
  %1032 = vmatpush1.bf16.msra.mxu0 %v1010
  %1033 = vmatprep.subr.bf16.mxu0 0
  %1034 = vmatpush1.bf16.msra.mxu0 %v1011
  %1035 = vmatprep.subr.bf16.mxu0 0
  %1036 = vmatpush1.bf16.msra.mxu0 %v1012
  %1037 = vmatprep.subr.bf16.mxu0 0
  %1038 = vmatpush1.bf16.msra.mxu0 0
  %1039 = vmatprep.subr.bf16.mxu0 0
  %1040 = vmatpush1.bf16.msra.mxu0 0
  %1041 = vmatprep.subr.bf16.mxu0 0
  %1042 = vmatpush1.bf16.msra.mxu0 0
  %1043 = vmatprep.subr.bf16.mxu0 0
  %1044 = vmatpush1.bf16.msra.mxu0 0
  %1045 = vmatprep.subr.bf16.mxu0 0
  %1046 = vmatpush1.bf16.msra.mxu0 0
  %1047 = vmatprep.subr.bf16.mxu0 0
  %1048 = vmatpush1.bf16.msra.mxu0 0
  %1049 = vmatprep.subr.bf16.mxu0 0
  %1050 = vmatpush1.bf16.msra.mxu0 0
  %1051 = vmatprep.subr.bf16.mxu0 0
  %1052 = vmatpush1.bf16.msra.mxu0 0
  %1053 = vmatprep.mubr.bf16.mxu0 0
  %1054 = vmatmul.mubr.bf16.gmra.mrb[0].mxu0 %v961
  %v1055 = vpop.f32.mrb[0].mxu0
  %v1056 = vadd.f32 %v972, %v1055
  %v1057 = vpop.f32.mrb[0].mxu0
  %v1058 = vpop.f32.mrb[0].mxu0
  %v1059 = vadd.f32 %v972, %v1058
  %v1060 = vpop.f32.mrb[0].mxu0
  %1061 = vmatprep.mubr.bf16.mxu0 0
  %1062 = vmatmul.mubr.bf16.gmra.mrb[0].mxu0 %v962
  %v1063 = vpop.f32.mrb[0].mxu0
  %v1064 = vadd.f32 %v972, %v1063
  %v1065 = vpop.f32.mrb[0].mxu0
  %v1066 = vpop.f32.mrb[0].mxu0
  %v1067 = vadd.f32 %v972, %v1066
  %v1068 = vpop.f32.mrb[0].mxu0
  %1069 = vmatprep.mubr.bf16.mxu0 0
  %1070 = vmatmul.mubr.bf16.gmra.mrb[0].mxu0 %v963
  %v1071 = vpop.f32.mrb[0].mxu0
  %v1072 = vadd.f32 %v972, %v1071
  %v1073 = vpop.f32.mrb[0].mxu0
  %v1074 = vpop.f32.mrb[0].mxu0
  %v1075 = vadd.f32 %v972, %v1074
  %v1076 = vpop.f32.mrb[0].mxu0
  %1077 = vmatprep.mubr.bf16.mxu0 0
  %1078 = vmatmul.mubr.bf16.gmra.mrb[0].mxu0 %v964
  %v1079 = vpop.f32.mrb[0].mxu0
  %v1080 = vadd.f32 %v972, %v1079
  %v1081 = vpop.f32.mrb[0].mxu0
  %v1082 = vpop.f32.mrb[0].mxu0
  %v1083 = vadd.f32 %v972, %v1082
  %v1084 = vpop.f32.mrb[0].mxu0
  %1085 = vmatprep.mubr.bf16.mxu0 0
  %1086 = vmatmul.mubr.bf16.gmra.mrb[0].mxu0 %v965
  %v1087 = vpop.f32.mrb[0].mxu0
  %v1088 = vadd.f32 %v972, %v1087
  %v1089 = vpop.f32.mrb[0].mxu0
  %v1090 = vpop.f32.mrb[0].mxu0
  %v1091 = vadd.f32 %v972, %v1090
  %v1092 = vpop.f32.mrb[0].mxu0
  %1093 = vmatprep.mubr.bf16.mxu0 0
  %1094 = vmatmul.mubr.bf16.gmra.mrb[0].mxu0 %v966
  %v1095 = vpop.f32.mrb[0].mxu0
  %v1096 = vadd.f32 %v972, %v1095
  %v1097 = vpop.f32.mrb[0].mxu0
  %v1098 = vpop.f32.mrb[0].mxu0
  %v1099 = vadd.f32 %v972, %v1098
  %v1100 = vpop.f32.mrb[0].mxu0
  %1101 = vmatprep.mubr.bf16.mxu0 0
  %1102 = vmatmul.mubr.bf16.gmra.mrb[0].mxu0 %v967
  %v1103 = vpop.f32.mrb[0].mxu0
  %v1104 = vadd.f32 %v972, %v1103
  %v1105 = vpop.f32.mrb[0].mxu0
  %v1106 = vpop.f32.mrb[0].mxu0
  %v1107 = vadd.f32 %v972, %v1106
  %v1108 = vpop.f32.mrb[0].mxu0
  %1109 = vmatprep.mubr.bf16.mxu0 0
  %1110 = vmatmul.mubr.bf16.gmra.mrb[0].mxu0 %v968
  %v1111 = vpop.f32.mrb[0].mxu0
  %v1112 = vadd.f32 %v972, %v1111
  %v1113 = vpop.f32.mrb[0].mxu0
  %v1114 = vpop.f32.mrb[0].mxu0
  %v1115 = vadd.f32 %v972, %v1114
  %v1116 = vpop.f32.mrb[0].mxu0
  %1117 = vdwg.mxu0
  %v1118 = vmax.f32 %v1056, 0.0
  %v1119 = vmax.f32 %v1059, 0.0
  %v1120 = vmax.f32 %v1064, 0.0
  %v1121 = vmax.f32 %v1067, 0.0
  %v1122 = vmax.f32 %v1072, 0.0
  %v1123 = vmax.f32 %v1075, 0.0
  %v1124 = vmax.f32 %v1080, 0.0
  %v1125 = vmax.f32 %v1083, 0.0
  %v1126 = vmax.f32 %v1088, 0.0
  %v1127 = vmax.f32 %v1091, 0.0
  %v1128 = vmax.f32 %v1096, 0.0
  %v1129 = vmax.f32 %v1099, 0.0
  %v1130 = vmax.f32 %v1104, 0.0
  %v1131 = vmax.f32 %v1107, 0.0
  %v1132 = vmax.f32 %v1112, 0.0
  %v1133 = vmax.f32 %v1115, 0.0
  %v1134 = vpack.c.bf16 %v1119, %v1118
  %v1135 = vpack.c.bf16 %v1121, %v1120
  %v1136 = vpack.c.bf16 %v1123, %v1122
  %v1137 = vpack.c.bf16 %v1125, %v1124
  %v1138 = vpack.c.bf16 %v1127, %v1126
  %v1139 = vpack.c.bf16 %v1129, %v1128
  %v1140 = vpack.c.bf16 %v1131, %v1130
  %v1141 = vpack.c.bf16 %v1133, %v1132
  %v1142 = vlaneseq
  %v1143 = vshrl.u32 %v1142, 7
  %v1144 = vsub.s32 3, %v1143
  %v1145 = vrot.slane %v59, %v1144
  %v1162 = vunpack.c.l.b16 %v749
  %v1163 = vunpack.c.l.b16 %v750
  %v1164 = vunpack.c.l.b16 %v751
  %v1165 = vunpack.c.l.b16 %v752
  %v1166 = vunpack.c.l.b16 %v753
  %v1167 = vunpack.c.l.b16 %v754
  %v1168 = vunpack.c.l.b16 %v755
  %v1169 = vunpack.c.l.b16 %v756
  %v1170 = vunpack.c.l.b16 %v757
  %v1171 = vunpack.c.l.b16 %v758
  %v1172 = vunpack.c.l.b16 %v759
  %v1173 = vunpack.c.l.b16 %v760
  %v1174 = vunpack.c.l.b16 %v761
  %v1175 = vunpack.c.l.b16 %v762
  %v1176 = vunpack.c.l.b16 %v763
  %v1177 = vunpack.c.l.b16 %v764
  %v1178 = vpack.c.b16 %v1163, %v1162
  %v1179 = vpack.c.b16 %v1165, %v1164
  %v1180 = vpack.c.b16 %v1167, %v1166
  %v1181 = vpack.c.b16 %v1169, %v1168
  %v1182 = vpack.c.b16 %v1171, %v1170
  %v1183 = vpack.c.b16 %v1173, %v1172
  %v1184 = vpack.c.b16 %v1175, %v1174
  %v1185 = vpack.c.b16 %v1177, %v1176
  %1194 = vmatprep.subr.bf16.mxu0 0
  %1195 = vmatpush1.bf16.msra.mxu0 %v1178
  %1196 = vmatprep.subr.bf16.mxu0 0
  %1197 = vmatpush1.bf16.msra.mxu0 %v1179
  %1198 = vmatprep.subr.bf16.mxu0 0
  %1199 = vmatpush1.bf16.msra.mxu0 %v1180
  %1200 = vmatprep.subr.bf16.mxu0 0
  %1201 = vmatpush1.bf16.msra.mxu0 %v1181
  %1202 = vmatprep.subr.bf16.mxu0 0
  %1203 = vmatpush1.bf16.msra.mxu0 %v1182
  %1204 = vmatprep.subr.bf16.mxu0 0
  %1205 = vmatpush1.bf16.msra.mxu0 %v1183
  %1206 = vmatprep.subr.bf16.mxu0 0
  %1207 = vmatpush1.bf16.msra.mxu0 %v1184
  %1208 = vmatprep.subr.bf16.mxu0 0
  %1209 = vmatpush1.bf16.msra.mxu0 %v1185
  %1210 = vmatprep.subr.bf16.mxu0 0
  %1211 = vmatpush1.bf16.msra.mxu0 0
  %1212 = vmatprep.subr.bf16.mxu0 0
  %1213 = vmatpush1.bf16.msra.mxu0 0
  %1214 = vmatprep.subr.bf16.mxu0 0
  %1215 = vmatpush1.bf16.msra.mxu0 0
  %1216 = vmatprep.subr.bf16.mxu0 0
  %1217 = vmatpush1.bf16.msra.mxu0 0
  %1218 = vmatprep.subr.bf16.mxu0 0
  %1219 = vmatpush1.bf16.msra.mxu0 0
  %1220 = vmatprep.subr.bf16.mxu0 0
  %1221 = vmatpush1.bf16.msra.mxu0 0
  %1222 = vmatprep.subr.bf16.mxu0 0
  %1223 = vmatpush1.bf16.msra.mxu0 0
  %1224 = vmatprep.subr.bf16.mxu0 0
  %1225 = vmatpush1.bf16.msra.mxu0 0
  %1226 = vmatprep.mubr.bf16.mxu0 0
  %1227 = vmatmul.mubr.bf16.gmra.mrb[0].mxu0 %v1134
  %v1228 = vpop.f32.mrb[0].mxu0
  %v1229 = vadd.f32 %v1145, %v1228
  %v1230 = vpop.f32.mrb[0].mxu0
  %v1231 = vpop.f32.mrb[0].mxu0
  %v1232 = vadd.f32 %v1145, %v1231
  %v1233 = vpop.f32.mrb[0].mxu0
  %1234 = vmatprep.mubr.bf16.mxu0 0
  %1235 = vmatmul.mubr.bf16.gmra.mrb[0].mxu0 %v1135
  %v1236 = vpop.f32.mrb[0].mxu0
  %v1237 = vadd.f32 %v1145, %v1236
  %v1238 = vpop.f32.mrb[0].mxu0
  %v1239 = vpop.f32.mrb[0].mxu0
  %v1240 = vadd.f32 %v1145, %v1239
  %v1241 = vpop.f32.mrb[0].mxu0
  %1242 = vmatprep.mubr.bf16.mxu0 0
  %1243 = vmatmul.mubr.bf16.gmra.mrb[0].mxu0 %v1136
  %v1244 = vpop.f32.mrb[0].mxu0
  %v1245 = vadd.f32 %v1145, %v1244
  %v1246 = vpop.f32.mrb[0].mxu0
  %v1247 = vpop.f32.mrb[0].mxu0
  %v1248 = vadd.f32 %v1145, %v1247
  %v1249 = vpop.f32.mrb[0].mxu0
  %1250 = vmatprep.mubr.bf16.mxu0 0
  %1251 = vmatmul.mubr.bf16.gmra.mrb[0].mxu0 %v1137
  %v1252 = vpop.f32.mrb[0].mxu0
  %v1253 = vadd.f32 %v1145, %v1252
  %v1254 = vpop.f32.mrb[0].mxu0
  %v1255 = vpop.f32.mrb[0].mxu0
  %v1256 = vadd.f32 %v1145, %v1255
  %v1257 = vpop.f32.mrb[0].mxu0
  %1258 = vmatprep.mubr.bf16.mxu0 0
  %1259 = vmatmul.mubr.bf16.gmra.mrb[0].mxu0 %v1138
  %v1260 = vpop.f32.mrb[0].mxu0
  %v1261 = vadd.f32 %v1145, %v1260
  %v1262 = vpop.f32.mrb[0].mxu0
  %v1263 = vpop.f32.mrb[0].mxu0
  %v1264 = vadd.f32 %v1145, %v1263
  %v1265 = vpop.f32.mrb[0].mxu0
  %1266 = vmatprep.mubr.bf16.mxu0 0
  %1267 = vmatmul.mubr.bf16.gmra.mrb[0].mxu0 %v1139
  %v1268 = vpop.f32.mrb[0].mxu0
  %v1269 = vadd.f32 %v1145, %v1268
  %v1270 = vpop.f32.mrb[0].mxu0
  %v1271 = vpop.f32.mrb[0].mxu0
  %v1272 = vadd.f32 %v1145, %v1271
  %v1273 = vpop.f32.mrb[0].mxu0
  %1274 = vmatprep.mubr.bf16.mxu0 0
  %1275 = vmatmul.mubr.bf16.gmra.mrb[0].mxu0 %v1140
  %v1276 = vpop.f32.mrb[0].mxu0
  %v1277 = vadd.f32 %v1145, %v1276
  %v1278 = vpop.f32.mrb[0].mxu0
  %v1279 = vpop.f32.mrb[0].mxu0
  %v1280 = vadd.f32 %v1145, %v1279
  %v1281 = vpop.f32.mrb[0].mxu0
  %1282 = vmatprep.mubr.bf16.mxu0 0
  %1283 = vmatmul.mubr.bf16.gmra.mrb[0].mxu0 %v1141
  %v1284 = vpop.f32.mrb[0].mxu0
  %v1285 = vadd.f32 %v1145, %v1284
  %v1286 = vpop.f32.mrb[0].mxu0
  %v1287 = vpop.f32.mrb[0].mxu0
  %v1288 = vadd.f32 %v1145, %v1287
  %v1289 = vpop.f32.mrb[0].mxu0
  %1290 = vdwg.mxu0
  %v1291 = vmax.f32 %v1229, 0.0
  %v1292 = vmax.f32 %v1232, 0.0
  %v1293 = vmax.f32 %v1237, 0.0
  %v1294 = vmax.f32 %v1240, 0.0
  %v1295 = vmax.f32 %v1245, 0.0
  %v1296 = vmax.f32 %v1248, 0.0
  %v1297 = vmax.f32 %v1253, 0.0
  %v1298 = vmax.f32 %v1256, 0.0
  %v1299 = vmax.f32 %v1261, 0.0
  %v1300 = vmax.f32 %v1264, 0.0
  %v1301 = vmax.f32 %v1269, 0.0
  %v1302 = vmax.f32 %v1272, 0.0
  %v1303 = vmax.f32 %v1277, 0.0
  %v1304 = vmax.f32 %v1280, 0.0
  %v1305 = vmax.f32 %v1285, 0.0
  %v1306 = vmax.f32 %v1288, 0.0
  %v1307 = vpack.c.bf16 %v1292, %v1291
  %v1308 = vpack.c.bf16 %v1294, %v1293
  %v1309 = vpack.c.bf16 %v1296, %v1295
  %v1310 = vpack.c.bf16 %v1298, %v1297
  %v1311 = vpack.c.bf16 %v1300, %v1299
  %v1312 = vpack.c.bf16 %v1302, %v1301
  %v1313 = vpack.c.bf16 %v1304, %v1303
  %v1314 = vpack.c.bf16 %v1306, %v1305
  %v1315 = vld [vmem:[%s5] sm:$0xf]
  %v1316 = vld [vmem:[%s5 + $0x4] sm:$0xf]
  %v1317 = vld [vmem:[%s5 + $0x8] sm:$0xf]
  %v1318 = vld [vmem:[%s5 + $0xc] sm:$0xf]
  %v1319 = vld [vmem:[%s5 + $0x10] sm:$0xf]
  %v1320 = vld [vmem:[%s5 + $0x14] sm:$0xf]
  %v1321 = vld [vmem:[%s5 + $0x18] sm:$0xf]
  %v1322 = vld [vmem:[%s5 + $0x1c] sm:$0xf]
  %v1323 = vld [vmem:[%s5 + $0x20] sm:$0xf]
  %v1324 = vld [vmem:[%s5 + $0x24] sm:$0xf]
  %v1325 = vld [vmem:[%s5 + $0x28] sm:$0xf]
  %v1326 = vld [vmem:[%s5 + $0x2c] sm:$0xf]
  %v1327 = vld [vmem:[%s5 + $0x30] sm:$0xf]
  %v1328 = vld [vmem:[%s5 + $0x34] sm:$0xf]
  %v1329 = vld [vmem:[%s5 + $0x38] sm:$0xf]
  %v1330 = vld [vmem:[%s5 + $0x3c] sm:$0xf]
  %v1331 = vld [vmem:[%s6] sm:$0x1]
  %v1333 = vlaneseq
  %v1334 = vshrl.u32 %v1333, 7
  %v1335 = vsub.s32 0, %v1334
  %v1336 = vrot.slane %v1331, %v1335
  %v1354 = vunpack.c.l.b16 %v1315
  %v1355 = vunpack.c.l.b16 %v1316
  %v1356 = vunpack.c.l.b16 %v1317
  %v1357 = vunpack.c.l.b16 %v1318
  %v1358 = vunpack.c.l.b16 %v1319
  %v1359 = vunpack.c.l.b16 %v1320
  %v1360 = vunpack.c.l.b16 %v1321
  %v1361 = vunpack.c.l.b16 %v1322
  %v1362 = vunpack.c.l.b16 %v1323
  %v1363 = vunpack.c.l.b16 %v1324
  %v1364 = vunpack.c.l.b16 %v1325
  %v1365 = vunpack.c.l.b16 %v1326
  %v1366 = vunpack.c.l.b16 %v1327
  %v1367 = vunpack.c.l.b16 %v1328
  %v1368 = vunpack.c.l.b16 %v1329
  %v1369 = vunpack.c.l.b16 %v1330
  %v1370 = vpack.c.b16 %v1355, %v1354
  %v1371 = vpack.c.b16 %v1357, %v1356
  %v1372 = vpack.c.b16 %v1359, %v1358
  %v1373 = vpack.c.b16 %v1361, %v1360
  %v1374 = vpack.c.b16 %v1363, %v1362
  %v1375 = vpack.c.b16 %v1365, %v1364
  %v1376 = vpack.c.b16 %v1367, %v1366
  %v1377 = vpack.c.b16 %v1369, %v1368
  %1386 = vmatprep.subr.bf16.mxu0 0
  %1387 = vmatpush1.bf16.msra.mxu0 %v1370
  %1388 = vmatprep.subr.bf16.mxu0 0
  %1389 = vmatpush1.bf16.msra.mxu0 %v1371
  %1390 = vmatprep.subr.bf16.mxu0 0
  %1391 = vmatpush1.bf16.msra.mxu0 %v1372
  %1392 = vmatprep.subr.bf16.mxu0 0
  %1393 = vmatpush1.bf16.msra.mxu0 %v1373
  %1394 = vmatprep.subr.bf16.mxu0 0
  %1395 = vmatpush1.bf16.msra.mxu0 %v1374
  %1396 = vmatprep.subr.bf16.mxu0 0
  %1397 = vmatpush1.bf16.msra.mxu0 %v1375
  %1398 = vmatprep.subr.bf16.mxu0 0
  %1399 = vmatpush1.bf16.msra.mxu0 %v1376
  %1400 = vmatprep.subr.bf16.mxu0 0
  %1401 = vmatpush1.bf16.msra.mxu0 %v1377
  %1402 = vmatprep.subr.bf16.mxu0 0
  %1403 = vmatpush1.bf16.msra.mxu0 0
  %1404 = vmatprep.subr.bf16.mxu0 0
  %1405 = vmatpush1.bf16.msra.mxu0 0
  %1406 = vmatprep.subr.bf16.mxu0 0
  %1407 = vmatpush1.bf16.msra.mxu0 0
  %1408 = vmatprep.subr.bf16.mxu0 0
  %1409 = vmatpush1.bf16.msra.mxu0 0
  %1410 = vmatprep.subr.bf16.mxu0 0
  %1411 = vmatpush1.bf16.msra.mxu0 0
  %1412 = vmatprep.subr.bf16.mxu0 0
  %1413 = vmatpush1.bf16.msra.mxu0 0
  %1414 = vmatprep.subr.bf16.mxu0 0
  %1415 = vmatpush1.bf16.msra.mxu0 0
  %1416 = vmatprep.subr.bf16.mxu0 0
  %1417 = vmatpush1.bf16.msra.mxu0 0
  %1418 = vmatprep.mubr.bf16.mxu0 0
  %1419 = vmatmul.mubr.bf16.gmra.mrb[0].mxu0 %v1307
  %v1420 = vpop.f32.mrb[0].mxu0
  %v1421 = vadd.f32 %v1336, %v1420
  %v1422 = vpop.f32.mrb[0].mxu0
  %v1423 = vpop.f32.mrb[0].mxu0
  %v1424 = vadd.f32 %v1336, %v1423
  %v1425 = vpop.f32.mrb[0].mxu0
  %1426 = vmatprep.mubr.bf16.mxu0 0
  %1427 = vmatmul.mubr.bf16.gmra.mrb[0].mxu0 %v1308
  %v1428 = vpop.f32.mrb[0].mxu0
  %v1429 = vadd.f32 %v1336, %v1428
  %v1430 = vpop.f32.mrb[0].mxu0
  %v1431 = vpop.f32.mrb[0].mxu0
  %v1432 = vadd.f32 %v1336, %v1431
  %v1433 = vpop.f32.mrb[0].mxu0
  %1434 = vmatprep.mubr.bf16.mxu0 0
  %1435 = vmatmul.mubr.bf16.gmra.mrb[0].mxu0 %v1309
  %v1436 = vpop.f32.mrb[0].mxu0
  %v1437 = vadd.f32 %v1336, %v1436
  %v1438 = vpop.f32.mrb[0].mxu0
  %v1439 = vpop.f32.mrb[0].mxu0
  %v1440 = vadd.f32 %v1336, %v1439
  %v1441 = vpop.f32.mrb[0].mxu0
  %1442 = vmatprep.mubr.bf16.mxu0 0
  %1443 = vmatmul.mubr.bf16.gmra.mrb[0].mxu0 %v1310
  %v1444 = vpop.f32.mrb[0].mxu0
  %v1445 = vadd.f32 %v1336, %v1444
  %v1446 = vpop.f32.mrb[0].mxu0
  %v1447 = vpop.f32.mrb[0].mxu0
  %v1448 = vadd.f32 %v1336, %v1447
  %v1449 = vpop.f32.mrb[0].mxu0
  %1450 = vmatprep.mubr.bf16.mxu0 0
  %1451 = vmatmul.mubr.bf16.gmra.mrb[0].mxu0 %v1311
  %v1452 = vpop.f32.mrb[0].mxu0
  %v1453 = vadd.f32 %v1336, %v1452
  %v1454 = vpop.f32.mrb[0].mxu0
  %v1455 = vpop.f32.mrb[0].mxu0
  %v1456 = vadd.f32 %v1336, %v1455
  %v1457 = vpop.f32.mrb[0].mxu0
  %1458 = vmatprep.mubr.bf16.mxu0 0
  %1459 = vmatmul.mubr.bf16.gmra.mrb[0].mxu0 %v1312
  %v1460 = vpop.f32.mrb[0].mxu0
  %v1461 = vadd.f32 %v1336, %v1460
  %v1462 = vpop.f32.mrb[0].mxu0
  %v1463 = vpop.f32.mrb[0].mxu0
  %v1464 = vadd.f32 %v1336, %v1463
  %v1465 = vpop.f32.mrb[0].mxu0
  %1466 = vmatprep.mubr.bf16.mxu0 0
  %1467 = vmatmul.mubr.bf16.gmra.mrb[0].mxu0 %v1313
  %v1468 = vpop.f32.mrb[0].mxu0
  %v1469 = vadd.f32 %v1336, %v1468
  %v1470 = vpop.f32.mrb[0].mxu0
  %v1471 = vpop.f32.mrb[0].mxu0
  %v1472 = vadd.f32 %v1336, %v1471
  %v1473 = vpop.f32.mrb[0].mxu0
  %1474 = vmatprep.mubr.bf16.mxu0 0
  %1475 = vmatmul.mubr.bf16.gmra.mrb[0].mxu0 %v1314
  %v1476 = vpop.f32.mrb[0].mxu0
  %v1477 = vadd.f32 %v1336, %v1476
  %v1478 = vpop.f32.mrb[0].mxu0
  %v1479 = vpop.f32.mrb[0].mxu0
  %v1480 = vadd.f32 %v1336, %v1479
  %v1481 = vpop.f32.mrb[0].mxu0
  %1482 = vdwg.mxu0
  %1483 = vst [vmem:[%s7] sm:$0xff] %v1421
  %1484 = vst [vmem:[%s7 + $0x8] sm:$0xff] %v1424
  %1485 = vst [vmem:[%s7 + $0x10] sm:$0xff] %v1429
  %1486 = vst [vmem:[%s7 + $0x18] sm:$0xff] %v1432
  %1487 = vst [vmem:[%s7 + $0x20] sm:$0xff] %v1437
  %1488 = vst [vmem:[%s7 + $0x28] sm:$0xff] %v1440
  %1489 = vst [vmem:[%s7 + $0x30] sm:$0xff] %v1445
  %1490 = vst [vmem:[%s7 + $0x38] sm:$0xff] %v1448
  %1491 = vst [vmem:[%s7 + $0x40] sm:$0xff] %v1453
  %1492 = vst [vmem:[%s7 + $0x48] sm:$0xff] %v1456
  %1493 = vst [vmem:[%s7 + $0x50] sm:$0xff] %v1461
  %1494 = vst [vmem:[%s7 + $0x58] sm:$0xff] %v1464
  %1495 = vst [vmem:[%s7 + $0x60] sm:$0xff] %v1469
  %1496 = vst [vmem:[%s7 + $0x68] sm:$0xff] %v1472
  %1497 = vst [vmem:[%s7 + $0x70] sm:$0xff] %v1477
  %1498 = vst [vmem:[%s7 + $0x78] sm:$0xff] %v1480
  // Predicated region
  $region30: #{_forward.1} parent=0 // pred_check
    _
  $region31: #{_forward.1} parent=0 // pred_check_branch
    %1500 = sbr.rel (0) target = $region33
  $region32: #{_forward.1} parent=0 // pred_region
    _
  $region33: #{_forward.1} parent=0 // pred_fallthru
    _
  // Predicated region
  $region34: #{_forward.1} parent=0 // pred_check
    _
  $region35: #{_forward.1} parent=0 // pred_check_branch
    %1502 = sbr.rel (0) target = $region37
  $region36: #{_forward.1} parent=0 // pred_region
    _
  $region37: #{_forward.1} parent=0 // pred_fallthru
    _

</llo_original>
